<compile_context>
chip_gen: v7x
topology: tpu7x:2x2x1
jax: 0.10.0
libtpu: 0.0.40
codegen_flags: <defaults>
</compile_context>

<pallas_src>
import jax
import jax.numpy as jnp
from jax.experimental import pallas as pl
from jax.experimental.pallas import tpu as pltpu

EMBED_DIM = 50     # logical embedding width
E_PAD = 128        # lane-dense padded embedding width (K of first matmul)
HIDDEN = 512
OUTPUT = 12        # logical number of classes
OUT_PAD = 128      # lane-dense padded head width
MAX_TILE_B = 512   # review sweep target 256-512; 512 fills the 2x256 MXU M dim


def _round_up(x, m):
    return ((x + m - 1) // m) * m


def _pick_tile_b(batch):
    """Batch tile: as large as possible up to 512, multiple of 16 (bf16 sublanes).

    - batch <= 512: one tile covering the whole (padded) batch -> per-grid-step
      overhead is paid exactly once and no rows are wasted.
    - batch  > 512: fixed 512-row tiles -> n_tiles >= 2, so v7x can shard the
      "parallel" batch axis across both TensorCores.
    """
    return min(_round_up(batch, 16), MAX_TILE_B)


def mlp_classifier_kernel(x_ref, w1_ref, b1_ref, w2_ref, b2_ref,
                          w3_ref, b3_ref, wl_ref, bl_ref, out_ref):
    # x_ref: (TILE_B, E_PAD) bf16 sentence vectors (already mean-reduced, zero-padded)
    x = x_ref[...]

    # Linear(E, 512) + ReLU   (bf16 inputs, f32 MXU accumulation)
    h = jnp.dot(x, w1_ref[...], preferred_element_type=jnp.float32) + b1_ref[...]
    h = jnp.maximum(h, 0.0).astype(jnp.bfloat16)
    # Linear(512, 512) + ReLU
    h = jnp.dot(h, w2_ref[...], preferred_element_type=jnp.float32) + b2_ref[...]
    h = jnp.maximum(h, 0.0).astype(jnp.bfloat16)
    # Linear(512, 512) + ReLU
    h = jnp.dot(h, w3_ref[...], preferred_element_type=jnp.float32) + b3_ref[...]
    h = jnp.maximum(h, 0.0).astype(jnp.bfloat16)
    # label head: Linear(512, OUT_PAD) (zero-padded beyond OUTPUT), no activation.
    logits = jnp.dot(h, wl_ref[...], preferred_element_type=jnp.float32) + bl_ref[...]
    # bf16 writeback halves output DMA; wrapper upcasts + slices to (B, OUTPUT).
    out_ref[...] = logits.astype(out_ref.dtype)


def mlp_classifier_forward(tokens, kparams):
    """tokens: (B, S) int32 token ids. Returns logits (B, OUTPUT) float32."""
    # Glue (XLA): bf16 embedding gather (padding_idx=0 is row 0 = zeros) and the
    # sequence mean with f32 accumulation.  Keeping this outside the kernel keeps
    # the kernel's DMA to the reduced (B, E) slab.
    x_emb = jnp.take(kparams["emb"], tokens, axis=0)          # (B, S, E) bf16
    sent = jnp.mean(x_emb, axis=1, dtype=jnp.float32)         # (B, E)  f32 accum

    B = sent.shape[0]
    tile_b = _pick_tile_b(B)
    n_tiles = pl.cdiv(B, tile_b)
    b_pad = n_tiles * tile_b

    # Zero-pad batch to a tile multiple and features to a lane-dense 128.
    sent_p = jnp.zeros((b_pad, E_PAD), jnp.bfloat16)
    sent_p = sent_p.at[:B, :EMBED_DIM].set(sent.astype(jnp.bfloat16))

    def resident(shape):
        # Weights/biases: constant index_map -> fetched once, VMEM-resident.
        # Single-buffered: no point double-buffering a block that never changes.
        return pl.BlockSpec(shape, lambda i: (0, 0), pipeline_mode=pl.Buffered(1))

    logits_p = pl.pallas_call(
        mlp_classifier_kernel,
        out_shape=jax.ShapeDtypeStruct((b_pad, OUT_PAD), jnp.bfloat16),
        grid=(n_tiles,),
        in_specs=[
            pl.BlockSpec((tile_b, E_PAD), lambda i: (i, 0)),   # activations: tiled over batch
            resident((E_PAD, HIDDEN)),   resident((1, HIDDEN)),
            resident((HIDDEN, HIDDEN)),  resident((1, HIDDEN)),
            resident((HIDDEN, HIDDEN)),  resident((1, HIDDEN)),
            resident((HIDDEN, OUT_PAD)), resident((1, OUT_PAD)),
        ],
        out_specs=pl.BlockSpec((tile_b, OUT_PAD), lambda i: (i, 0)),
        # ~4 MiB per step at tile_b=512; set vmem_limit_bytes explicitly only if
        # TILE_B is ever pushed to 1024+.
        compiler_params=pltpu.CompilerParams(
            dimension_semantics=("parallel",)),                # batch tiles independent (2 TCs on v7x)
    )(sent_p,
      kparams["w1_p"], kparams["b1"],
      kparams["w2"],   kparams["b2"],
      kparams["w3"],   kparams["b3"],
      kparams["wl_p"], kparams["bl_p"])

    # Strip batch / head padding, upcast to f32.
    return logits_p[:B, :OUTPUT].astype(jnp.float32)


def init_params(key, vocab_size):
    """Logical (unpadded, f32) parameters matching the PyTorch module's shapes."""
    # TODO(synk): the PyTorch __init__ loads GloVe char embeddings + tokenizer.vocab
    # from disk; replaced here with a random embedding table built in-script.
    ks = jax.random.split(key, 9)

    def linear(kw, kb, fan_in, fan_out):
        bound = 1.0 / jnp.sqrt(fan_in)
        w = jax.random.uniform(kw, (fan_in, fan_out), jnp.float32, -bound, bound)
        b = jax.random.uniform(kb, (1, fan_out), jnp.float32, -bound, bound)
        return w, b

    emb = jax.random.normal(ks[0], (vocab_size, EMBED_DIM), jnp.float32)
    emb = emb.at[0].set(0.0)  # padding_idx=0

    w1, b1 = linear(ks[1], ks[2], EMBED_DIM, HIDDEN)
    w2, b2 = linear(ks[3], ks[4], HIDDEN, HIDDEN)
    w3, b3 = linear(ks[5], ks[6], HIDDEN, HIDDEN)
    wl, bl = linear(ks[7], ks[8], HIDDEN, OUTPUT)

    return {"emb": emb, "w1": w1, "b1": b1, "w2": w2, "b2": b2,
            "w3": w3, "b3": b3, "wl": wl, "bl": bl}


def pack_params(params):
    """Kernel-layout parameters: bf16 weights/embeddings, lane-dense zero padding."""
    w1_p = jnp.zeros((E_PAD, HIDDEN), jnp.bfloat16)
    w1_p = w1_p.at[:EMBED_DIM, :].set(params["w1"].astype(jnp.bfloat16))

    wl_p = jnp.zeros((HIDDEN, OUT_PAD), jnp.bfloat16)
    wl_p = wl_p.at[:, :OUTPUT].set(params["wl"].astype(jnp.bfloat16))

    bl_p = jnp.zeros((1, OUT_PAD), jnp.float32)
    bl_p = bl_p.at[:, :OUTPUT].set(params["bl"])

    return {
        "emb": params["emb"].astype(jnp.bfloat16),  # bf16 gather halves HBM traffic
        "w1_p": w1_p, "b1": params["b1"],
        "w2": params["w2"].astype(jnp.bfloat16), "b2": params["b2"],
        "w3": params["w3"].astype(jnp.bfloat16), "b3": params["b3"],
        "wl_p": wl_p, "bl_p": bl_p,
    }


def reference_forward(tokens, params):
    """XLA reference mirroring the kernel's bf16-weight / f32-accum / bf16-out math."""
    x = jnp.take(params["emb"].astype(jnp.bfloat16), tokens, axis=0)
    sent = jnp.mean(x, axis=1, dtype=jnp.float32)

    def layer(h, w, b, relu=True):
        y = jnp.dot(h.astype(jnp.bfloat16), w.astype(jnp.bfloat16),
                    preferred_element_type=jnp.float32) + b
        return jnp.maximum(y, 0.0) if relu else y

    h = layer(sent, params["w1"], params["b1"])
    h = layer(h, params["w2"], params["b2"])
    h = layer(h, params["w3"], params["b3"])
    out = layer(h, params["wl"], params["bl"], relu=False)
    return out.astype(jnp.bfloat16).astype(jnp.float32)   # mirror bf16 writeback


if __name__ == "__main__":
    key = jax.random.PRNGKey(0)
    k_param, k_tok = jax.random.split(key)

    batch_size = 2
    seq_len = 8
    vocab_size = 32

    params = init_params(k_param, vocab_size)
    kparams = pack_params(params)
    tokens = jax.random.randint(k_tok, (batch_size, seq_len), 0, vocab_size,
                                dtype=jnp.int32)

    logits = mlp_classifier_forward(tokens, kparams)
    logits = jax.block_until_ready(logits)

    ref = reference_forward(tokens, params)
    assert logits.shape == (batch_size, OUTPUT)
    assert jnp.allclose(logits, ref, atol=1e-2, rtol=1e-2), \
        float(jnp.max(jnp.abs(logits - ref)))

    print("KERNEL_OK")
</pallas_src>

<mosaic_0001>
module attributes {stable_mosaic.version = 11 : i64} {
  func.func @mlp_classifier_kernel(%arg0: i32, %arg1: memref<16x128xbf16, #tpu.memory_space<vmem>>, %arg2: memref<128x512xbf16, #tpu.memory_space<vmem>>, %arg3: memref<1x512xf32, #tpu.memory_space<vmem>>, %arg4: memref<512x512xbf16, #tpu.memory_space<vmem>>, %arg5: memref<1x512xf32, #tpu.memory_space<vmem>>, %arg6: memref<512x512xbf16, #tpu.memory_space<vmem>>, %arg7: memref<1x512xf32, #tpu.memory_space<vmem>>, %arg8: memref<512x128xbf16, #tpu.memory_space<vmem>>, %arg9: memref<1x128xf32, #tpu.memory_space<vmem>>, %arg10: memref<16x128xbf16, #tpu.memory_space<vmem>>) attributes {dimension_semantics = [#tpu.dimension_semantics<parallel>], iteration_bounds = array<i64: 1>, scalar_prefetch = 0 : i64, scratch_operands = 0 : i64, tpu.core_type = #tpu.core_type<tc>, window_params = [{transform_indices = @transform_0, window_bounds = array<i64: 16, 128>}, {pipeline_mode = #tpu.pipeline_mode<synchronous>, transform_indices = @transform_1, window_bounds = array<i64: 128, 512>}, {pipeline_mode = #tpu.pipeline_mode<synchronous>, transform_indices = @transform_2, window_bounds = array<i64: 1, 512>}, {pipeline_mode = #tpu.pipeline_mode<synchronous>, transform_indices = @transform_3, window_bounds = array<i64: 512, 512>}, {pipeline_mode = #tpu.pipeline_mode<synchronous>, transform_indices = @transform_4, window_bounds = array<i64: 1, 512>}, {pipeline_mode = #tpu.pipeline_mode<synchronous>, transform_indices = @transform_5, window_bounds = array<i64: 512, 512>}, {pipeline_mode = #tpu.pipeline_mode<synchronous>, transform_indices = @transform_6, window_bounds = array<i64: 1, 512>}, {pipeline_mode = #tpu.pipeline_mode<synchronous>, transform_indices = @transform_7, window_bounds = array<i64: 512, 128>}, {pipeline_mode = #tpu.pipeline_mode<synchronous>, transform_indices = @transform_8, window_bounds = array<i64: 1, 128>}, {transform_indices = @transform_9, window_bounds = array<i64: 16, 128>}]} {
    %c0 = arith.constant 0 : index
    %c0_0 = arith.constant 0 : index
    %0 = vector.load %arg1[%c0, %c0_0] : memref<16x128xbf16, #tpu.memory_space<vmem>>, vector<16x128xbf16>
    %c0_1 = arith.constant 0 : index
    %c0_2 = arith.constant 0 : index
    %1 = vector.load %arg2[%c0_1, %c0_2] : memref<128x512xbf16, #tpu.memory_space<vmem>>, vector<128x512xbf16>
    %cst = arith.constant dense<0.000000e+00> : vector<16x512xf32>
    %2 = tpu.matmul %0, %1, %cst {dimension_numbers = #tpu.dot_dimension_numbers<[1], [0], [0], [1], [0, 0, 1, 1], [], []>} : vector<16x128xbf16>, vector<128x512xbf16>, vector<16x512xf32> -> vector<16x512xf32>
    %c0_3 = arith.constant 0 : index
    %c0_4 = arith.constant 0 : index
    %3 = vector.load %arg3[%c0_3, %c0_4] : memref<1x512xf32, #tpu.memory_space<vmem>>, vector<1x512xf32>
    %4 = vector.broadcast %3 : vector<1x512xf32> to vector<16x512xf32>
    %5 = arith.addf %2, %4 : vector<16x512xf32>
    %cst_5 = arith.constant 0.000000e+00 : f32
    %6 = vector.broadcast %cst_5 : f32 to vector<16x512xf32>
    %7 = arith.maximumf %5, %6 : vector<16x512xf32>
    %8 = arith.truncf %7 : vector<16x512xf32> to vector<16x512xbf16>
    %c0_6 = arith.constant 0 : index
    %c0_7 = arith.constant 0 : index
    %9 = vector.load %arg4[%c0_6, %c0_7] : memref<512x512xbf16, #tpu.memory_space<vmem>>, vector<512x512xbf16>
    %cst_8 = arith.constant dense<0.000000e+00> : vector<16x512xf32>
    %10 = tpu.matmul %8, %9, %cst_8 {dimension_numbers = #tpu.dot_dimension_numbers<[1], [0], [0], [1], [0, 0, 1, 1], [], []>} : vector<16x512xbf16>, vector<512x512xbf16>, vector<16x512xf32> -> vector<16x512xf32>
    %c0_9 = arith.constant 0 : index
    %c0_10 = arith.constant 0 : index
    %11 = vector.load %arg5[%c0_9, %c0_10] : memref<1x512xf32, #tpu.memory_space<vmem>>, vector<1x512xf32>
    %12 = vector.broadcast %11 : vector<1x512xf32> to vector<16x512xf32>
    %13 = arith.addf %10, %12 : vector<16x512xf32>
    %cst_11 = arith.constant 0.000000e+00 : f32
    %14 = vector.broadcast %cst_11 : f32 to vector<16x512xf32>
    %15 = arith.maximumf %13, %14 : vector<16x512xf32>
    %16 = arith.truncf %15 : vector<16x512xf32> to vector<16x512xbf16>
    %c0_12 = arith.constant 0 : index
    %c0_13 = arith.constant 0 : index
    %17 = vector.load %arg6[%c0_12, %c0_13] : memref<512x512xbf16, #tpu.memory_space<vmem>>, vector<512x512xbf16>
    %cst_14 = arith.constant dense<0.000000e+00> : vector<16x512xf32>
    %18 = tpu.matmul %16, %17, %cst_14 {dimension_numbers = #tpu.dot_dimension_numbers<[1], [0], [0], [1], [0, 0, 1, 1], [], []>} : vector<16x512xbf16>, vector<512x512xbf16>, vector<16x512xf32> -> vector<16x512xf32>
    %c0_15 = arith.constant 0 : index
    %c0_16 = arith.constant 0 : index
    %19 = vector.load %arg7[%c0_15, %c0_16] : memref<1x512xf32, #tpu.memory_space<vmem>>, vector<1x512xf32>
    %20 = vector.broadcast %19 : vector<1x512xf32> to vector<16x512xf32>
    %21 = arith.addf %18, %20 : vector<16x512xf32>
    %cst_17 = arith.constant 0.000000e+00 : f32
    %22 = vector.broadcast %cst_17 : f32 to vector<16x512xf32>
    %23 = arith.maximumf %21, %22 : vector<16x512xf32>
    %24 = arith.truncf %23 : vector<16x512xf32> to vector<16x512xbf16>
    %c0_18 = arith.constant 0 : index
    %c0_19 = arith.constant 0 : index
    %25 = vector.load %arg8[%c0_18, %c0_19] : memref<512x128xbf16, #tpu.memory_space<vmem>>, vector<512x128xbf16>
    %cst_20 = arith.constant dense<0.000000e+00> : vector<16x128xf32>
    %26 = tpu.matmul %24, %25, %cst_20 {dimension_numbers = #tpu.dot_dimension_numbers<[1], [0], [0], [1], [0, 0, 1, 1], [], []>} : vector<16x512xbf16>, vector<512x128xbf16>, vector<16x128xf32> -> vector<16x128xf32>
    %c0_21 = arith.constant 0 : index
    %c0_22 = arith.constant 0 : index
    %27 = vector.load %arg9[%c0_21, %c0_22] : memref<1x128xf32, #tpu.memory_space<vmem>>, vector<1x128xf32>
    %28 = vector.broadcast %27 : vector<1x128xf32> to vector<16x128xf32>
    %29 = arith.addf %26, %28 : vector<16x128xf32>
    %30 = arith.truncf %29 : vector<16x128xf32> to vector<16x128xbf16>
    %c0_23 = arith.constant 0 : index
    %c0_24 = arith.constant 0 : index
    %31 = vector.load %arg10[%c0_23, %c0_24] : memref<16x128xbf16, #tpu.memory_space<vmem>>, vector<16x128xbf16>
    tpu.vector_store %arg10[%c0_23, %c0_24], %30 {strides = array<i32>} : memref<16x128xbf16, #tpu.memory_space<vmem>>, vector<16x128xbf16>,
    return
  }
  func.func @transform_0(%arg0: i32) -> (i32, i32) {
    %c0_i32 = arith.constant 0 : i32
    %c0_i32_0 = arith.constant 0 : i32
    return %arg0, %c0_i32 : i32, i32
  }
  func.func @transform_1(%arg0: i32) -> (i32, i32) {
    %c0_i32 = arith.constant 0 : i32
    %c0_i32_0 = arith.constant 0 : i32
    %c0_i32_1 = arith.constant 0 : i32
    return %c0_i32, %c0_i32_0 : i32, i32
  }
  func.func @transform_2(%arg0: i32) -> (i32, i32) {
    %c0_i32 = arith.constant 0 : i32
    %c0_i32_0 = arith.constant 0 : i32
    %c0_i32_1 = arith.constant 0 : i32
    return %c0_i32, %c0_i32_0 : i32, i32
  }
  func.func @transform_3(%arg0: i32) -> (i32, i32) {
    %c0_i32 = arith.constant 0 : i32
    %c0_i32_0 = arith.constant 0 : i32
    %c0_i32_1 = arith.constant 0 : i32
    return %c0_i32, %c0_i32_0 : i32, i32
  }
  func.func @transform_4(%arg0: i32) -> (i32, i32) {
    %c0_i32 = arith.constant 0 : i32
    %c0_i32_0 = arith.constant 0 : i32
    %c0_i32_1 = arith.constant 0 : i32
    return %c0_i32, %c0_i32_0 : i32, i32
  }
  func.func @transform_5(%arg0: i32) -> (i32, i32) {
    %c0_i32 = arith.constant 0 : i32
    %c0_i32_0 = arith.constant 0 : i32
    %c0_i32_1 = arith.constant 0 : i32
    return %c0_i32, %c0_i32_0 : i32, i32
  }
  func.func @transform_6(%arg0: i32) -> (i32, i32) {
    %c0_i32 = arith.constant 0 : i32
    %c0_i32_0 = arith.constant 0 : i32
    %c0_i32_1 = arith.constant 0 : i32
    return %c0_i32, %c0_i32_0 : i32, i32
  }
  func.func @transform_7(%arg0: i32) -> (i32, i32) {
    %c0_i32 = arith.constant 0 : i32
    %c0_i32_0 = arith.constant 0 : i32
    %c0_i32_1 = arith.constant 0 : i32
    return %c0_i32, %c0_i32_0 : i32, i32
  }
  func.func @transform_8(%arg0: i32) -> (i32, i32) {
    %c0_i32 = arith.constant 0 : i32
    %c0_i32_0 = arith.constant 0 : i32
    %c0_i32_1 = arith.constant 0 : i32
    return %c0_i32, %c0_i32_0 : i32, i32
  }
  func.func @transform_9(%arg0: i32) -> (i32, i32) {
    %c0_i32 = arith.constant 0 : i32
    %c0_i32_0 = arith.constant 0 : i32
    return %arg0, %c0_i32 : i32, i32
  }
}

</mosaic_0001>

<llo_original>
// kernel: tpu_custom_call.1
$region0: #{tpu_custom_call.1}
  #allocation0 [shape = 'u32[]', space=smem, size = 0x4, offset = 0x4, fixed_abs, tag = 'smem constant byte address 0x4 - core index']
  #allocation1 [shape = 'u32[144,128]{1,0:T(1,128)}', space=vmem, size = 0x12000, scoped, tag = 'internal scratch']
  %s0 = inlined_call_operand.hbm [shape: bf16[16,128], index: 0, kind: input, shape index: {}]
  %s1 = inlined_call_operand.hbm [shape: bf16[128,512], index: 1, kind: input, shape index: {}]
  %s2 = inlined_call_operand.vmem [shape: f32[1,512], index: 2, kind: input, shape index: {}]
  %s3 = inlined_call_operand.hbm [shape: bf16[512,512], index: 3, kind: input, shape index: {}]
  %s4 = inlined_call_operand.vmem [shape: f32[1,512], index: 4, kind: input, shape index: {}]
  %s5 = inlined_call_operand.hbm [shape: bf16[512,512], index: 5, kind: input, shape index: {}]
  %s6 = inlined_call_operand.vmem [shape: f32[1,512], index: 6, kind: input, shape index: {}]
  %s7 = inlined_call_operand.hbm [shape: bf16[512,128], index: 7, kind: input, shape index: {}]
  %s8 = inlined_call_operand.vmem [shape: f32[1,128], index: 8, kind: input, shape index: {}]
  %s9 = inlined_call_operand.hbm [shape: bf16[16,128], index: 9, kind: output, shape index: {}]
  %s10 = sld [smem:[#allocation0]]
  $region66: #{tpu_custom_call.1} parent=0
    _
  %s12 = ssub.s32 1, %s10
  %s13 = scalar_select 0, %s12, %s10
  $region1: #{tpu_custom_call.1} parent=0
    #allocation2 [shape = 'u8[4096]{0}', space=vmem, size = 0x1000, scoped, tag = 'input window, operand 0, single buffered']
    #allocation3 [shape = 's32[1]{0}', space=sflag, size = 0x4, scoped, tag = 'scoped memory for tpu_custom_call.1']
    #allocation4 [shape = 's32[1]{0}', space=sflag, size = 0x4, scoped, tag = 'scoped memory for tpu_custom_call.1']
    #allocation5 [shape = 'u8[131072]{0}', space=vmem, size = 0x20000, scoped, tag = 'input window, operand 1, single buffered']
    #allocation6 [shape = 's32[1]{0}', space=sflag, size = 0x4, scoped, tag = 'scoped memory for tpu_custom_call.1']
    #allocation7 [shape = 'u8[524288]{0}', space=vmem, size = 0x80000, scoped, tag = 'input window, operand 3, single buffered']
    #allocation8 [shape = 'u8[524288]{0}', space=vmem, size = 0x80000, scoped, tag = 'input window, operand 5, single buffered']
    #allocation9 [shape = 's32[1]{0}', space=sflag, size = 0x4, scoped, tag = 'scoped memory for tpu_custom_call.1']
    #allocation10 [shape = 'u8[131072]{0}', space=vmem, size = 0x20000, scoped, tag = 'input window, operand 7, single buffered']
    #allocation11 [shape = 'u8[4096]{0}', space=vmem, size = 0x1000, scoped, tag = 'output window, operand 0, single buffered']
    %14 = vsyncpa [#allocation3], 0
    %15 = vsyncpa [#allocation6], 0
    %16 = vsyncpa [#allocation9], 0
    %17 = vsyncpa [#allocation4], 0
    // Predicated region
    $region2: #{tpu_custom_call.1} parent=1 // pred_check
      _
    $region3: #{tpu_custom_call.1} parent=1 // pred_check_branch
      %19 = sbr.rel (0) target = $region5
    $region4: #{tpu_custom_call.1} parent=1 // pred_region
      %s21 = ssub.s32 128, 128
      %22 = vsyncadd [#allocation3], %s21
      %s23 = sshll.u32 [#allocation2], 4
      %s24 = int_to_ptr.vmem [resolvable:$true] %s23
      %29 = dma.hbm_to_vmem [thread:$0]  %s0, 128, %s24, [#allocation3], 64, 64, 4
    $region5: #{tpu_custom_call.1} parent=1 // pred_fallthru
      _
    // Predicated region
    $region6: #{tpu_custom_call.1} parent=1 // pred_check
      _
    $region7: #{tpu_custom_call.1} parent=1 // pred_check_branch
      %31 = sbr.rel (0) target = $region9
    $region8: #{tpu_custom_call.1} parent=1 // pred_region
      %s33 = ssub.s32 4096, 4096
      %34 = vsyncadd [#allocation6], %s33
      %s35 = sshll.u32 [#allocation5], 4
      %s36 = int_to_ptr.vmem [resolvable:$true] %s35
      %41 = dma.hbm_to_vmem [thread:$0]  %s1, 4096, %s36, [#allocation6], 256, 256, 16
    $region9: #{tpu_custom_call.1} parent=1 // pred_fallthru
      _
    // Predicated region
    $region10: #{tpu_custom_call.1} parent=1 // pred_check
      _
    $region11: #{tpu_custom_call.1} parent=1 // pred_check_branch
      %43 = sbr.rel (0) target = $region13
    $region12: #{tpu_custom_call.1} parent=1 // pred_region
      _
    $region13: #{tpu_custom_call.1} parent=1 // pred_fallthru
      _
    // Predicated region
    $region14: #{tpu_custom_call.1} parent=1 // pred_check
      _
    $region15: #{tpu_custom_call.1} parent=1 // pred_check_branch
      %45 = sbr.rel (0) target = $region17
    $region16: #{tpu_custom_call.1} parent=1 // pred_region
      %s47 = ssub.s32 16384, 16384
      %48 = vsyncadd [#allocation6], %s47
      %s49 = sshll.u32 [#allocation7], 4
      %s50 = int_to_ptr.vmem [resolvable:$true] %s49
      %55 = dma.hbm_to_vmem [thread:$0]  %s3, 16384, %s50, [#allocation6], 256, 256, 16
    $region17: #{tpu_custom_call.1} parent=1 // pred_fallthru
      _
    // Predicated region
    $region18: #{tpu_custom_call.1} parent=1 // pred_check
      _
    $region19: #{tpu_custom_call.1} parent=1 // pred_check_branch
      %57 = sbr.rel (0) target = $region21
    $region20: #{tpu_custom_call.1} parent=1 // pred_region
      _
    $region21: #{tpu_custom_call.1} parent=1 // pred_fallthru
      _
    // Predicated region
    $region22: #{tpu_custom_call.1} parent=1 // pred_check
      _
    $region23: #{tpu_custom_call.1} parent=1 // pred_check_branch
      %59 = sbr.rel (0) target = $region25
    $region24: #{tpu_custom_call.1} parent=1 // pred_region
      %s61 = ssub.s32 16384, 16384
      %62 = vsyncadd [#allocation9], %s61
      %s63 = sshll.u32 [#allocation8], 4
      %s64 = int_to_ptr.vmem [resolvable:$true] %s63
      %69 = dma.hbm_to_vmem [thread:$0]  %s5, 16384, %s64, [#allocation9], 256, 256, 16
    $region25: #{tpu_custom_call.1} parent=1 // pred_fallthru
      _
    // Predicated region
    $region26: #{tpu_custom_call.1} parent=1 // pred_check
      _
    $region27: #{tpu_custom_call.1} parent=1 // pred_check_branch
      %71 = sbr.rel (0) target = $region29
    $region28: #{tpu_custom_call.1} parent=1 // pred_region
      _
    $region29: #{tpu_custom_call.1} parent=1 // pred_fallthru
      _
    // Predicated region
    $region30: #{tpu_custom_call.1} parent=1 // pred_check
      _
    $region31: #{tpu_custom_call.1} parent=1 // pred_check_branch
      %73 = sbr.rel (0) target = $region33
    $region32: #{tpu_custom_call.1} parent=1 // pred_region
      %s75 = ssub.s32 4096, 4096
      %76 = vsyncadd [#allocation9], %s75
      %s77 = sshll.u32 [#allocation10], 4
      %s78 = int_to_ptr.vmem [resolvable:$true] %s77
      %83 = dma.hbm_to_vmem [thread:$0]  %s7, 4096, %s78, [#allocation9], 64, 64, 4
    $region33: #{tpu_custom_call.1} parent=1 // pred_fallthru
      _
    // Predicated region
    $region34: #{tpu_custom_call.1} parent=1 // pred_check
      _
    $region35: #{tpu_custom_call.1} parent=1 // pred_check_branch
      %85 = sbr.rel (0) target = $region37
    $region36: #{tpu_custom_call.1} parent=1 // pred_region
      _
    $region37: #{tpu_custom_call.1} parent=1 // pred_fallthru
      _
    // Predicated region
    $region38: #{tpu_custom_call.1} parent=1 // pred_check
      _
    $region39: #{tpu_custom_call.1} parent=1 // pred_check_branch
      %87 = sbr.rel (0) target = $region41
    $region40: #{tpu_custom_call.1} parent=1 // pred_region
      %88 = dma.done [#allocation3], 128
    $region41: #{tpu_custom_call.1} parent=1 // pred_fallthru
      _
    // Predicated region
    $region42: #{tpu_custom_call.1} parent=1 // pred_check
      _
    $region43: #{tpu_custom_call.1} parent=1 // pred_check_branch
      %90 = sbr.rel (0) target = $region45
    $region44: #{tpu_custom_call.1} parent=1 // pred_region
      %91 = dma.done [#allocation6], 4096
    $region45: #{tpu_custom_call.1} parent=1 // pred_fallthru
      _
    // Predicated region
    $region46: #{tpu_custom_call.1} parent=1 // pred_check
      _
    $region47: #{tpu_custom_call.1} parent=1 // pred_check_branch
      %93 = sbr.rel (0) target = $region49
    $region48: #{tpu_custom_call.1} parent=1 // pred_region
      %94 = dma.done [#allocation6], 16384
    $region49: #{tpu_custom_call.1} parent=1 // pred_fallthru
      _
    // Predicated region
    $region50: #{tpu_custom_call.1} parent=1 // pred_check
      _
    $region51: #{tpu_custom_call.1} parent=1 // pred_check_branch
      %96 = sbr.rel (0) target = $region53
    $region52: #{tpu_custom_call.1} parent=1 // pred_region
      %97 = dma.done [#allocation9], 16384
    $region53: #{tpu_custom_call.1} parent=1 // pred_fallthru
      _
    // Predicated region
    $region54: #{tpu_custom_call.1} parent=1 // pred_check
      _
    $region55: #{tpu_custom_call.1} parent=1 // pred_check_branch
      %99 = sbr.rel (0) target = $region57
    $region56: #{tpu_custom_call.1} parent=1 // pred_region
      %100 = dma.done [#allocation9], 4096
    $region57: #{tpu_custom_call.1} parent=1 // pred_fallthru
      _
    %v102 = vld [vmem:[#allocation2] sm:$0xf]
    %v103 = vld [vmem:[#allocation2 + $0x4] sm:$0xf]
    %v104 = vld [vmem:[#allocation5] sm:$0xff]
    %v105 = vld [vmem:[#allocation5 + $0x8] sm:$0xff]
    %v106 = vld [vmem:[#allocation5 + $0x10] sm:$0xff]
    %v107 = vld [vmem:[#allocation5 + $0x18] sm:$0xff]
    %v108 = vld [vmem:[#allocation5 + $0x20] sm:$0xff]
    %v109 = vld [vmem:[#allocation5 + $0x28] sm:$0xff]
    %v110 = vld [vmem:[#allocation5 + $0x30] sm:$0xff]
    %v111 = vld [vmem:[#allocation5 + $0x38] sm:$0xff]
    %v112 = vld [vmem:[#allocation5 + $0x40] sm:$0xff]
    %v113 = vld [vmem:[#allocation5 + $0x48] sm:$0xff]
    %v114 = vld [vmem:[#allocation5 + $0x50] sm:$0xff]
    %v115 = vld [vmem:[#allocation5 + $0x58] sm:$0xff]
    %v116 = vld [vmem:[#allocation5 + $0x60] sm:$0xff]
    %v117 = vld [vmem:[#allocation5 + $0x68] sm:$0xff]
    %v118 = vld [vmem:[#allocation5 + $0x70] sm:$0xff]
    %v119 = vld [vmem:[#allocation5 + $0x78] sm:$0xff]
    %v120 = vld [vmem:[#allocation5 + $0x80] sm:$0xff]
    %v121 = vld [vmem:[#allocation5 + $0x88] sm:$0xff]
    %v122 = vld [vmem:[#allocation5 + $0x90] sm:$0xff]
    %v123 = vld [vmem:[#allocation5 + $0x98] sm:$0xff]
    %v124 = vld [vmem:[#allocation5 + $0xa0] sm:$0xff]
    %v125 = vld [vmem:[#allocation5 + $0xa8] sm:$0xff]
    %v126 = vld [vmem:[#allocation5 + $0xb0] sm:$0xff]
    %v127 = vld [vmem:[#allocation5 + $0xb8] sm:$0xff]
    %v128 = vld [vmem:[#allocation5 + $0xc0] sm:$0xff]
    %v129 = vld [vmem:[#allocation5 + $0xc8] sm:$0xff]
    %v130 = vld [vmem:[#allocation5 + $0xd0] sm:$0xff]
    %v131 = vld [vmem:[#allocation5 + $0xd8] sm:$0xff]
    %v132 = vld [vmem:[#allocation5 + $0xe0] sm:$0xff]
    %v133 = vld [vmem:[#allocation5 + $0xe8] sm:$0xff]
    %v134 = vld [vmem:[#allocation5 + $0xf0] sm:$0xff]
    %v135 = vld [vmem:[#allocation5 + $0xf8] sm:$0xff]
    %v136 = vld [vmem:[%s2] sm:$0xf]
    %v138 = vlaneseq
    %v139 = vshrl.u32 %v138, 7
    %v140 = vsub.s32 0, %v139
    %v141 = vrot.slane %v136, %v140
    %v142 = vlaneseq
    %v143 = vshrl.u32 %v142, 7
    %v144 = vsub.s32 1, %v143
    %v145 = vrot.slane %v136, %v144
    %v146 = vlaneseq
    %v147 = vshrl.u32 %v146, 7
    %v148 = vsub.s32 2, %v147
    %v149 = vrot.slane %v136, %v148
    %v150 = vlaneseq
    %v151 = vshrl.u32 %v150, 7
    %v152 = vsub.s32 3, %v151
    %v153 = vrot.slane %v136, %v152
    %v160 = vunpack.c.l.b16 %v102
    %v161 = vunpack.c.l.b16 %v103
    %v162 = vpack.c.b16 %v161, %v160
    %v196 = vunpack.c.l.b16 %v104
    %v197 = vunpack.c.h.b16 %v104
    %v198 = vunpack.c.l.b16 %v105
    %v199 = vunpack.c.h.b16 %v105
    %v200 = vunpack.c.l.b16 %v106
    %v201 = vunpack.c.h.b16 %v106
    %v202 = vunpack.c.l.b16 %v107
    %v203 = vunpack.c.h.b16 %v107
    %v204 = vunpack.c.l.b16 %v108
    %v205 = vunpack.c.h.b16 %v108
    %v206 = vunpack.c.l.b16 %v109
    %v207 = vunpack.c.h.b16 %v109
    %v208 = vunpack.c.l.b16 %v110
    %v209 = vunpack.c.h.b16 %v110
    %v210 = vunpack.c.l.b16 %v111
    %v211 = vunpack.c.h.b16 %v111
    %v212 = vunpack.c.l.b16 %v112
    %v213 = vunpack.c.h.b16 %v112
    %v214 = vunpack.c.l.b16 %v113
    %v215 = vunpack.c.h.b16 %v113
    %v216 = vunpack.c.l.b16 %v114
    %v217 = vunpack.c.h.b16 %v114
    %v218 = vunpack.c.l.b16 %v115
    %v219 = vunpack.c.h.b16 %v115
    %v220 = vunpack.c.l.b16 %v116
    %v221 = vunpack.c.h.b16 %v116
    %v222 = vunpack.c.l.b16 %v117
    %v223 = vunpack.c.h.b16 %v117
    %v224 = vunpack.c.l.b16 %v118
    %v225 = vunpack.c.h.b16 %v118
    %v226 = vunpack.c.l.b16 %v119
    %v227 = vunpack.c.h.b16 %v119
    %v228 = vunpack.c.l.b16 %v120
    %v229 = vunpack.c.h.b16 %v120
    %v230 = vunpack.c.l.b16 %v121
    %v231 = vunpack.c.h.b16 %v121
    %v232 = vunpack.c.l.b16 %v122
    %v233 = vunpack.c.h.b16 %v122
    %v234 = vunpack.c.l.b16 %v123
    %v235 = vunpack.c.h.b16 %v123
    %v236 = vunpack.c.l.b16 %v124
    %v237 = vunpack.c.h.b16 %v124
    %v238 = vunpack.c.l.b16 %v125
    %v239 = vunpack.c.h.b16 %v125
    %v240 = vunpack.c.l.b16 %v126
    %v241 = vunpack.c.h.b16 %v126
    %v242 = vunpack.c.l.b16 %v127
    %v243 = vunpack.c.h.b16 %v127
    %v244 = vunpack.c.l.b16 %v128
    %v245 = vunpack.c.h.b16 %v128
    %v246 = vunpack.c.l.b16 %v129
    %v247 = vunpack.c.h.b16 %v129
    %v248 = vunpack.c.l.b16 %v130
    %v249 = vunpack.c.h.b16 %v130
    %v250 = vunpack.c.l.b16 %v131
    %v251 = vunpack.c.h.b16 %v131
    %v252 = vunpack.c.l.b16 %v132
    %v253 = vunpack.c.h.b16 %v132
    %v254 = vunpack.c.l.b16 %v133
    %v255 = vunpack.c.h.b16 %v133
    %v256 = vunpack.c.l.b16 %v134
    %v257 = vunpack.c.h.b16 %v134
    %v258 = vunpack.c.l.b16 %v135
    %v259 = vunpack.c.h.b16 %v135
    %v260 = vpack.c.b16 %v200, %v196
    %v261 = vpack.c.b16 %v201, %v197
    %v262 = vpack.c.b16 %v202, %v198
    %v263 = vpack.c.b16 %v203, %v199
    %v264 = vpack.c.b16 %v208, %v204
    %v265 = vpack.c.b16 %v209, %v205
    %v266 = vpack.c.b16 %v210, %v206
    %v267 = vpack.c.b16 %v211, %v207
    %v268 = vpack.c.b16 %v216, %v212
    %v269 = vpack.c.b16 %v217, %v213
    %v270 = vpack.c.b16 %v218, %v214
    %v271 = vpack.c.b16 %v219, %v215
    %v272 = vpack.c.b16 %v224, %v220
    %v273 = vpack.c.b16 %v225, %v221
    %v274 = vpack.c.b16 %v226, %v222
    %v275 = vpack.c.b16 %v227, %v223
    %v276 = vpack.c.b16 %v232, %v228
    %v277 = vpack.c.b16 %v233, %v229
    %v278 = vpack.c.b16 %v234, %v230
    %v279 = vpack.c.b16 %v235, %v231
    %v280 = vpack.c.b16 %v240, %v236
    %v281 = vpack.c.b16 %v241, %v237
    %v282 = vpack.c.b16 %v242, %v238
    %v283 = vpack.c.b16 %v243, %v239
    %v284 = vpack.c.b16 %v248, %v244
    %v285 = vpack.c.b16 %v249, %v245
    %v286 = vpack.c.b16 %v250, %v246
    %v287 = vpack.c.b16 %v251, %v247
    %v288 = vpack.c.b16 %v256, %v252
    %v289 = vpack.c.b16 %v257, %v253
    %v290 = vpack.c.b16 %v258, %v254
    %v291 = vpack.c.b16 %v259, %v255
    %324 = vmatprep.subr.bf16.mxu0 %v261
    %325 = vmatpush1.bf16.msra.mxu0 %v260
    %326 = vmatprep.subr.bf16.mxu0 %v265
    %327 = vmatpush1.bf16.msra.mxu0 %v264
    %328 = vmatprep.subr.bf16.mxu0 %v269
    %329 = vmatpush1.bf16.msra.mxu0 %v268
    %330 = vmatprep.subr.bf16.mxu0 %v273
    %331 = vmatpush1.bf16.msra.mxu0 %v272
    %332 = vmatprep.subr.bf16.mxu0 %v277
    %333 = vmatpush1.bf16.msra.mxu0 %v276
    %334 = vmatprep.subr.bf16.mxu0 %v281
    %335 = vmatpush1.bf16.msra.mxu0 %v280
    %336 = vmatprep.subr.bf16.mxu0 %v285
    %337 = vmatpush1.bf16.msra.mxu0 %v284
    %338 = vmatprep.subr.bf16.mxu0 %v289
    %339 = vmatpush1.bf16.msra.mxu0 %v288
    %340 = vmatprep.subr.bf16.mxu0 0
    %341 = vmatpush1.bf16.msra.mxu0 0
    %342 = vmatprep.subr.bf16.mxu0 0
    %343 = vmatpush1.bf16.msra.mxu0 0
    %344 = vmatprep.subr.bf16.mxu0 0
    %345 = vmatpush1.bf16.msra.mxu0 0
    %346 = vmatprep.subr.bf16.mxu0 0
    %347 = vmatpush1.bf16.msra.mxu0 0
    %348 = vmatprep.subr.bf16.mxu0 0
    %349 = vmatpush1.bf16.msra.mxu0 0
    %350 = vmatprep.subr.bf16.mxu0 0
    %351 = vmatpush1.bf16.msra.mxu0 0
    %352 = vmatprep.subr.bf16.mxu0 0
    %353 = vmatpush1.bf16.msra.mxu0 0
    %354 = vmatprep.subr.bf16.mxu0 0
    %355 = vmatpush1.bf16.msra.mxu0 0
    %356 = vmatprep.mubr.bf16.mxu0 0
    %357 = vmatmul.mubr.bf16.gmra.mrb[0].mxu0 %v162
    %v358 = vpop.f32.mrb[0].mxu0
    %v359 = vadd.f32 %v141, %v358
    %v360 = vpop.f32.mrb[0].mxu0
    %v361 = vadd.f32 %v145, %v360
    %v362 = vpop.f32.mrb[0].mxu0
    %v363 = vadd.f32 %v141, %v362
    %v364 = vpop.f32.mrb[0].mxu0
    %v365 = vadd.f32 %v145, %v364
    %366 = vdwg.mxu0
    %367 = vmatprep.subr.bf16.mxu0 %v263
    %368 = vmatpush1.bf16.msra.mxu0 %v262
    %369 = vmatprep.subr.bf16.mxu0 %v267
    %370 = vmatpush1.bf16.msra.mxu0 %v266
    %371 = vmatprep.subr.bf16.mxu0 %v271
    %372 = vmatpush1.bf16.msra.mxu0 %v270
    %373 = vmatprep.subr.bf16.mxu0 %v275
    %374 = vmatpush1.bf16.msra.mxu0 %v274
    %375 = vmatprep.subr.bf16.mxu0 %v279
    %376 = vmatpush1.bf16.msra.mxu0 %v278
    %377 = vmatprep.subr.bf16.mxu0 %v283
    %378 = vmatpush1.bf16.msra.mxu0 %v282
    %379 = vmatprep.subr.bf16.mxu0 %v287
    %380 = vmatpush1.bf16.msra.mxu0 %v286
    %381 = vmatprep.subr.bf16.mxu0 %v291
    %382 = vmatpush1.bf16.msra.mxu0 %v290
    %383 = vmatprep.subr.bf16.mxu0 0
    %384 = vmatpush1.bf16.msra.mxu0 0
    %385 = vmatprep.subr.bf16.mxu0 0
    %386 = vmatpush1.bf16.msra.mxu0 0
    %387 = vmatprep.subr.bf16.mxu0 0
    %388 = vmatpush1.bf16.msra.mxu0 0
    %389 = vmatprep.subr.bf16.mxu0 0
    %390 = vmatpush1.bf16.msra.mxu0 0
    %391 = vmatprep.subr.bf16.mxu0 0
    %392 = vmatpush1.bf16.msra.mxu0 0
    %393 = vmatprep.subr.bf16.mxu0 0
    %394 = vmatpush1.bf16.msra.mxu0 0
    %395 = vmatprep.subr.bf16.mxu0 0
    %396 = vmatpush1.bf16.msra.mxu0 0
    %397 = vmatprep.subr.bf16.mxu0 0
    %398 = vmatpush1.bf16.msra.mxu0 0
    %399 = vmatprep.mubr.bf16.mxu0 0
    %400 = vmatmul.mubr.bf16.gmra.mrb[0].mxu0 %v162
    %v401 = vpop.f32.mrb[0].mxu0
    %v402 = vadd.f32 %v149, %v401
    %v403 = vpop.f32.mrb[0].mxu0
    %v404 = vadd.f32 %v153, %v403
    %v405 = vpop.f32.mrb[0].mxu0
    %v406 = vadd.f32 %v149, %v405
    %v407 = vpop.f32.mrb[0].mxu0
    %v408 = vadd.f32 %v153, %v407
    %409 = vdwg.mxu0
    %v410 = vmax.f32 %v359, 0.0
    %v411 = vmax.f32 %v361, 0.0
    %v412 = vmax.f32 %v402, 0.0
    %v413 = vmax.f32 %v404, 0.0
    %v414 = vmax.f32 %v363, 0.0
    %v415 = vmax.f32 %v365, 0.0
    %v416 = vmax.f32 %v406, 0.0
    %v417 = vmax.f32 %v408, 0.0
    %v418 = vpack.c.bf16 %v414, %v410
    %v419 = vpack.c.bf16 %v415, %v411
    %v420 = vpack.c.bf16 %v416, %v412
    %v421 = vpack.c.bf16 %v417, %v413
    %v422 = vld [vmem:[#allocation7] sm:$0xff]
    %v423 = vld [vmem:[#allocation7 + $0x8] sm:$0xff]
    %v424 = vld [vmem:[#allocation7 + $0x10] sm:$0xff]
    %v425 = vld [vmem:[#allocation7 + $0x18] sm:$0xff]
    %v426 = vld [vmem:[#allocation7 + $0x20] sm:$0xff]
    %v427 = vld [vmem:[#allocation7 + $0x28] sm:$0xff]
    %v428 = vld [vmem:[#allocation7 + $0x30] sm:$0xff]
    %v429 = vld [vmem:[#allocation7 + $0x38] sm:$0xff]
    %v430 = vld [vmem:[#allocation7 + $0x40] sm:$0xff]
    %v431 = vld [vmem:[#allocation7 + $0x48] sm:$0xff]
    %v432 = vld [vmem:[#allocation7 + $0x50] sm:$0xff]
    %v433 = vld [vmem:[#allocation7 + $0x58] sm:$0xff]
    %v434 = vld [vmem:[#allocation7 + $0x60] sm:$0xff]
    %v435 = vld [vmem:[#allocation7 + $0x68] sm:$0xff]
    %v436 = vld [vmem:[#allocation7 + $0x70] sm:$0xff]
    %v437 = vld [vmem:[#allocation7 + $0x78] sm:$0xff]
    %v438 = vld [vmem:[#allocation7 + $0x80] sm:$0xff]
    %v439 = vld [vmem:[#allocation7 + $0x88] sm:$0xff]
    %v440 = vld [vmem:[#allocation7 + $0x90] sm:$0xff]
    %v441 = vld [vmem:[#allocation7 + $0x98] sm:$0xff]
    %v442 = vld [vmem:[#allocation7 + $0xa0] sm:$0xff]
    %v443 = vld [vmem:[#allocation7 + $0xa8] sm:$0xff]
    %v444 = vld [vmem:[#allocation7 + $0xb0] sm:$0xff]
    %v445 = vld [vmem:[#allocation7 + $0xb8] sm:$0xff]
    %v446 = vld [vmem:[#allocation7 + $0xc0] sm:$0xff]
    %v447 = vld [vmem:[#allocation7 + $0xc8] sm:$0xff]
    %v448 = vld [vmem:[#allocation7 + $0xd0] sm:$0xff]
    %v449 = vld [vmem:[#allocation7 + $0xd8] sm:$0xff]
    %v450 = vld [vmem:[#allocation7 + $0xe0] sm:$0xff]
    %v451 = vld [vmem:[#allocation7 + $0xe8] sm:$0xff]
    %v452 = vld [vmem:[#allocation7 + $0xf0] sm:$0xff]
    %v453 = vld [vmem:[#allocation7 + $0xf8] sm:$0xff]
    %v454 = vld [vmem:[#allocation7 + $0x100] sm:$0xff]
    %v455 = vld [vmem:[#allocation7 + $0x108] sm:$0xff]
    %v456 = vld [vmem:[#allocation7 + $0x110] sm:$0xff]
    %v457 = vld [vmem:[#allocation7 + $0x118] sm:$0xff]
    %v458 = vld [vmem:[#allocation7 + $0x120] sm:$0xff]
    %v459 = vld [vmem:[#allocation7 + $0x128] sm:$0xff]
    %v460 = vld [vmem:[#allocation7 + $0x130] sm:$0xff]
    %v461 = vld [vmem:[#allocation7 + $0x138] sm:$0xff]
    %v462 = vld [vmem:[#allocation7 + $0x140] sm:$0xff]
    %v463 = vld [vmem:[#allocation7 + $0x148] sm:$0xff]
    %v464 = vld [vmem:[#allocation7 + $0x150] sm:$0xff]
    %v465 = vld [vmem:[#allocation7 + $0x158] sm:$0xff]
    %v466 = vld [vmem:[#allocation7 + $0x160] sm:$0xff]
    %v467 = vld [vmem:[#allocation7 + $0x168] sm:$0xff]
    %v468 = vld [vmem:[#allocation7 + $0x170] sm:$0xff]
    %v469 = vld [vmem:[#allocation7 + $0x178] sm:$0xff]
    %v470 = vld [vmem:[#allocation7 + $0x180] sm:$0xff]
    %v471 = vld [vmem:[#allocation7 + $0x188] sm:$0xff]
    %v472 = vld [vmem:[#allocation7 + $0x190] sm:$0xff]
    %v473 = vld [vmem:[#allocation7 + $0x198] sm:$0xff]
    %v474 = vld [vmem:[#allocation7 + $0x1a0] sm:$0xff]
    %v475 = vld [vmem:[#allocation7 + $0x1a8] sm:$0xff]
    %v476 = vld [vmem:[#allocation7 + $0x1b0] sm:$0xff]
    %v477 = vld [vmem:[#allocation7 + $0x1b8] sm:$0xff]
    %v478 = vld [vmem:[#allocation7 + $0x1c0] sm:$0xff]
    %v479 = vld [vmem:[#allocation7 + $0x1c8] sm:$0xff]
    %v480 = vld [vmem:[#allocation7 + $0x1d0] sm:$0xff]
    %v481 = vld [vmem:[#allocation7 + $0x1d8] sm:$0xff]
    %v482 = vld [vmem:[#allocation7 + $0x1e0] sm:$0xff]
    %v483 = vld [vmem:[#allocation7 + $0x1e8] sm:$0xff]
    %v484 = vld [vmem:[#allocation7 + $0x1f0] sm:$0xff]
    %v485 = vld [vmem:[#allocation7 + $0x1f8] sm:$0xff]
    %v486 = vld [vmem:[#allocation7 + $0x200] sm:$0xff]
    %v487 = vld [vmem:[#allocation7 + $0x208] sm:$0xff]
    %v488 = vld [vmem:[#allocation7 + $0x210] sm:$0xff]
    %v489 = vld [vmem:[#allocation7 + $0x218] sm:$0xff]
    %v490 = vld [vmem:[#allocation7 + $0x220] sm:$0xff]
    %v491 = vld [vmem:[#allocation7 + $0x228] sm:$0xff]
    %v492 = vld [vmem:[#allocation7 + $0x230] sm:$0xff]
    %v493 = vld [vmem:[#allocation7 + $0x238] sm:$0xff]
    %v494 = vld [vmem:[#allocation7 + $0x240] sm:$0xff]
    %v495 = vld [vmem:[#allocation7 + $0x248] sm:$0xff]
    %v496 = vld [vmem:[#allocation7 + $0x250] sm:$0xff]
    %v497 = vld [vmem:[#allocation7 + $0x258] sm:$0xff]
    %v498 = vld [vmem:[#allocation7 + $0x260] sm:$0xff]
    %v499 = vld [vmem:[#allocation7 + $0x268] sm:$0xff]
    %v500 = vld [vmem:[#allocation7 + $0x270] sm:$0xff]
    %v501 = vld [vmem:[#allocation7 + $0x278] sm:$0xff]
    %v502 = vld [vmem:[#allocation7 + $0x280] sm:$0xff]
    %v503 = vld [vmem:[#allocation7 + $0x288] sm:$0xff]
    %v504 = vld [vmem:[#allocation7 + $0x290] sm:$0xff]
    %v505 = vld [vmem:[#allocation7 + $0x298] sm:$0xff]
    %v506 = vld [vmem:[#allocation7 + $0x2a0] sm:$0xff]
    %v507 = vld [vmem:[#allocation7 + $0x2a8] sm:$0xff]
    %v508 = vld [vmem:[#allocation7 + $0x2b0] sm:$0xff]
    %v509 = vld [vmem:[#allocation7 + $0x2b8] sm:$0xff]
    %v510 = vld [vmem:[#allocation7 + $0x2c0] sm:$0xff]
    %v511 = vld [vmem:[#allocation7 + $0x2c8] sm:$0xff]
    %v512 = vld [vmem:[#allocation7 + $0x2d0] sm:$0xff]
    %v513 = vld [vmem:[#allocation7 + $0x2d8] sm:$0xff]
    %v514 = vld [vmem:[#allocation7 + $0x2e0] sm:$0xff]
    %v515 = vld [vmem:[#allocation7 + $0x2e8] sm:$0xff]
    %v516 = vld [vmem:[#allocation7 + $0x2f0] sm:$0xff]
    %v517 = vld [vmem:[#allocation7 + $0x2f8] sm:$0xff]
    %v518 = vld [vmem:[#allocation7 + $0x300] sm:$0xff]
    %v519 = vld [vmem:[#allocation7 + $0x308] sm:$0xff]
    %v520 = vld [vmem:[#allocation7 + $0x310] sm:$0xff]
    %v521 = vld [vmem:[#allocation7 + $0x318] sm:$0xff]
    %v522 = vld [vmem:[#allocation7 + $0x320] sm:$0xff]
    %v523 = vld [vmem:[#allocation7 + $0x328] sm:$0xff]
    %v524 = vld [vmem:[#allocation7 + $0x330] sm:$0xff]
    %v525 = vld [vmem:[#allocation7 + $0x338] sm:$0xff]
    %v526 = vld [vmem:[#allocation7 + $0x340] sm:$0xff]
    %v527 = vld [vmem:[#allocation7 + $0x348] sm:$0xff]
    %v528 = vld [vmem:[#allocation7 + $0x350] sm:$0xff]
    %v529 = vld [vmem:[#allocation7 + $0x358] sm:$0xff]
    %v530 = vld [vmem:[#allocation7 + $0x360] sm:$0xff]
    %v531 = vld [vmem:[#allocation7 + $0x368] sm:$0xff]
    %v532 = vld [vmem:[#allocation7 + $0x370] sm:$0xff]
    %v533 = vld [vmem:[#allocation7 + $0x378] sm:$0xff]
    %v534 = vld [vmem:[#allocation7 + $0x380] sm:$0xff]
    %v535 = vld [vmem:[#allocation7 + $0x388] sm:$0xff]
    %v536 = vld [vmem:[#allocation7 + $0x390] sm:$0xff]
    %v537 = vld [vmem:[#allocation7 + $0x398] sm:$0xff]
    %v538 = vld [vmem:[#allocation7 + $0x3a0] sm:$0xff]
    %v539 = vld [vmem:[#allocation7 + $0x3a8] sm:$0xff]
    %v540 = vld [vmem:[#allocation7 + $0x3b0] sm:$0xff]
    %v541 = vld [vmem:[#allocation7 + $0x3b8] sm:$0xff]
    %v542 = vld [vmem:[#allocation7 + $0x3c0] sm:$0xff]
    %v543 = vld [vmem:[#allocation7 + $0x3c8] sm:$0xff]
    %v544 = vld [vmem:[#allocation7 + $0x3d0] sm:$0xff]
    %v545 = vld [vmem:[#allocation7 + $0x3d8] sm:$0xff]
    %v546 = vld [vmem:[#allocation7 + $0x3e0] sm:$0xff]
    %v547 = vld [vmem:[#allocation7 + $0x3e8] sm:$0xff]
    %v548 = vld [vmem:[#allocation7 + $0x3f0] sm:$0xff]
    %v549 = vld [vmem:[#allocation7 + $0x3f8] sm:$0xff]
    %v550 = vld [vmem:[%s4] sm:$0xf]
    %v552 = vlaneseq
    %v553 = vshrl.u32 %v552, 7
    %v554 = vsub.s32 0, %v553
    %v555 = vrot.slane %v550, %v554
    %v556 = vlaneseq
    %v557 = vshrl.u32 %v556, 7
    %v558 = vsub.s32 1, %v557
    %v559 = vrot.slane %v550, %v558
    %v560 = vlaneseq
    %v561 = vshrl.u32 %v560, 7
    %v562 = vsub.s32 2, %v561
    %v563 = vrot.slane %v550, %v562
    %v564 = vlaneseq
    %v565 = vshrl.u32 %v564, 7
    %v566 = vsub.s32 3, %v565
    %v567 = vrot.slane %v550, %v566
    %v700 = vunpack.c.l.b16 %v422
    %v701 = vunpack.c.h.b16 %v422
    %v702 = vunpack.c.l.b16 %v423
    %v703 = vunpack.c.h.b16 %v423
    %v704 = vunpack.c.l.b16 %v424
    %v705 = vunpack.c.h.b16 %v424
    %v706 = vunpack.c.l.b16 %v425
    %v707 = vunpack.c.h.b16 %v425
    %v708 = vunpack.c.l.b16 %v426
    %v709 = vunpack.c.h.b16 %v426
    %v710 = vunpack.c.l.b16 %v427
    %v711 = vunpack.c.h.b16 %v427
    %v712 = vunpack.c.l.b16 %v428
    %v713 = vunpack.c.h.b16 %v428
    %v714 = vunpack.c.l.b16 %v429
    %v715 = vunpack.c.h.b16 %v429
    %v716 = vunpack.c.l.b16 %v430
    %v717 = vunpack.c.h.b16 %v430
    %v718 = vunpack.c.l.b16 %v431
    %v719 = vunpack.c.h.b16 %v431
    %v720 = vunpack.c.l.b16 %v432
    %v721 = vunpack.c.h.b16 %v432
    %v722 = vunpack.c.l.b16 %v433
    %v723 = vunpack.c.h.b16 %v433
    %v724 = vunpack.c.l.b16 %v434
    %v725 = vunpack.c.h.b16 %v434
    %v726 = vunpack.c.l.b16 %v435
    %v727 = vunpack.c.h.b16 %v435
    %v728 = vunpack.c.l.b16 %v436
    %v729 = vunpack.c.h.b16 %v436
    %v730 = vunpack.c.l.b16 %v437
    %v731 = vunpack.c.h.b16 %v437
    %v732 = vunpack.c.l.b16 %v438
    %v733 = vunpack.c.h.b16 %v438
    %v734 = vunpack.c.l.b16 %v439
    %v735 = vunpack.c.h.b16 %v439
    %v736 = vunpack.c.l.b16 %v440
    %v737 = vunpack.c.h.b16 %v440
    %v738 = vunpack.c.l.b16 %v441
    %v739 = vunpack.c.h.b16 %v441
    %v740 = vunpack.c.l.b16 %v442
    %v741 = vunpack.c.h.b16 %v442
    %v742 = vunpack.c.l.b16 %v443
    %v743 = vunpack.c.h.b16 %v443
    %v744 = vunpack.c.l.b16 %v444
    %v745 = vunpack.c.h.b16 %v444
    %v746 = vunpack.c.l.b16 %v445
    %v747 = vunpack.c.h.b16 %v445
    %v748 = vunpack.c.l.b16 %v446
    %v749 = vunpack.c.h.b16 %v446
    %v750 = vunpack.c.l.b16 %v447
    %v751 = vunpack.c.h.b16 %v447
    %v752 = vunpack.c.l.b16 %v448
    %v753 = vunpack.c.h.b16 %v448
    %v754 = vunpack.c.l.b16 %v449
    %v755 = vunpack.c.h.b16 %v449
    %v756 = vunpack.c.l.b16 %v450
    %v757 = vunpack.c.h.b16 %v450
    %v758 = vunpack.c.l.b16 %v451
    %v759 = vunpack.c.h.b16 %v451
    %v760 = vunpack.c.l.b16 %v452
    %v761 = vunpack.c.h.b16 %v452
    %v762 = vunpack.c.l.b16 %v453
    %v763 = vunpack.c.h.b16 %v453
    %v764 = vunpack.c.l.b16 %v454
    %v765 = vunpack.c.h.b16 %v454
    %v766 = vunpack.c.l.b16 %v455
    %v767 = vunpack.c.h.b16 %v455
    %v768 = vunpack.c.l.b16 %v456
    %v769 = vunpack.c.h.b16 %v456
    %v770 = vunpack.c.l.b16 %v457
    %v771 = vunpack.c.h.b16 %v457
    %v772 = vunpack.c.l.b16 %v458
    %v773 = vunpack.c.h.b16 %v458
    %v774 = vunpack.c.l.b16 %v459
    %v775 = vunpack.c.h.b16 %v459
    %v776 = vunpack.c.l.b16 %v460
    %v777 = vunpack.c.h.b16 %v460
    %v778 = vunpack.c.l.b16 %v461
    %v779 = vunpack.c.h.b16 %v461
    %v780 = vunpack.c.l.b16 %v462
    %v781 = vunpack.c.h.b16 %v462
    %v782 = vunpack.c.l.b16 %v463
    %v783 = vunpack.c.h.b16 %v463
    %v784 = vunpack.c.l.b16 %v464
    %v785 = vunpack.c.h.b16 %v464
    %v786 = vunpack.c.l.b16 %v465
    %v787 = vunpack.c.h.b16 %v465
    %v788 = vunpack.c.l.b16 %v466
    %v789 = vunpack.c.h.b16 %v466
    %v790 = vunpack.c.l.b16 %v467
    %v791 = vunpack.c.h.b16 %v467
    %v792 = vunpack.c.l.b16 %v468
    %v793 = vunpack.c.h.b16 %v468
    %v794 = vunpack.c.l.b16 %v469
    %v795 = vunpack.c.h.b16 %v469
    %v796 = vunpack.c.l.b16 %v470
    %v797 = vunpack.c.h.b16 %v470
    %v798 = vunpack.c.l.b16 %v471
    %v799 = vunpack.c.h.b16 %v471
    %v800 = vunpack.c.l.b16 %v472
    %v801 = vunpack.c.h.b16 %v472
    %v802 = vunpack.c.l.b16 %v473
    %v803 = vunpack.c.h.b16 %v473
    %v804 = vunpack.c.l.b16 %v474
    %v805 = vunpack.c.h.b16 %v474
    %v806 = vunpack.c.l.b16 %v475
    %v807 = vunpack.c.h.b16 %v475
    %v808 = vunpack.c.l.b16 %v476
    %v809 = vunpack.c.h.b16 %v476
    %v810 = vunpack.c.l.b16 %v477
    %v811 = vunpack.c.h.b16 %v477
    %v812 = vunpack.c.l.b16 %v478
    %v813 = vunpack.c.h.b16 %v478
    %v814 = vunpack.c.l.b16 %v479
    %v815 = vunpack.c.h.b16 %v479
    %v816 = vunpack.c.l.b16 %v480
    %v817 = vunpack.c.h.b16 %v480
    %v818 = vunpack.c.l.b16 %v481
    %v819 = vunpack.c.h.b16 %v481
    %v820 = vunpack.c.l.b16 %v482
    %v821 = vunpack.c.h.b16 %v482
    %v822 = vunpack.c.l.b16 %v483
    %v823 = vunpack.c.h.b16 %v483
    %v824 = vunpack.c.l.b16 %v484
    %v825 = vunpack.c.h.b16 %v484
    %v826 = vunpack.c.l.b16 %v485
    %v827 = vunpack.c.h.b16 %v485
    %v828 = vunpack.c.l.b16 %v486
    %v829 = vunpack.c.h.b16 %v486
    %v830 = vunpack.c.l.b16 %v487
    %v831 = vunpack.c.h.b16 %v487
    %v832 = vunpack.c.l.b16 %v488
    %v833 = vunpack.c.h.b16 %v488
    %v834 = vunpack.c.l.b16 %v489
    %v835 = vunpack.c.h.b16 %v489
    %v836 = vunpack.c.l.b16 %v490
    %v837 = vunpack.c.h.b16 %v490
    %v838 = vunpack.c.l.b16 %v491
    %v839 = vunpack.c.h.b16 %v491
    %v840 = vunpack.c.l.b16 %v492
    %v841 = vunpack.c.h.b16 %v492
    %v842 = vunpack.c.l.b16 %v493
    %v843 = vunpack.c.h.b16 %v493
    %v844 = vunpack.c.l.b16 %v494
    %v845 = vunpack.c.h.b16 %v494
    %v846 = vunpack.c.l.b16 %v495
    %v847 = vunpack.c.h.b16 %v495
    %v848 = vunpack.c.l.b16 %v496
    %v849 = vunpack.c.h.b16 %v496
    %v850 = vunpack.c.l.b16 %v497
    %v851 = vunpack.c.h.b16 %v497
    %v852 = vunpack.c.l.b16 %v498
    %v853 = vunpack.c.h.b16 %v498
    %v854 = vunpack.c.l.b16 %v499
    %v855 = vunpack.c.h.b16 %v499
    %v856 = vunpack.c.l.b16 %v500
    %v857 = vunpack.c.h.b16 %v500
    %v858 = vunpack.c.l.b16 %v501
    %v859 = vunpack.c.h.b16 %v501
    %v860 = vunpack.c.l.b16 %v502
    %v861 = vunpack.c.h.b16 %v502
    %v862 = vunpack.c.l.b16 %v503
    %v863 = vunpack.c.h.b16 %v503
    %v864 = vunpack.c.l.b16 %v504
    %v865 = vunpack.c.h.b16 %v504
    %v866 = vunpack.c.l.b16 %v505
    %v867 = vunpack.c.h.b16 %v505
    %v868 = vunpack.c.l.b16 %v506
    %v869 = vunpack.c.h.b16 %v506
    %v870 = vunpack.c.l.b16 %v507
    %v871 = vunpack.c.h.b16 %v507
    %v872 = vunpack.c.l.b16 %v508
    %v873 = vunpack.c.h.b16 %v508
    %v874 = vunpack.c.l.b16 %v509
    %v875 = vunpack.c.h.b16 %v509
    %v876 = vunpack.c.l.b16 %v510
    %v877 = vunpack.c.h.b16 %v510
    %v878 = vunpack.c.l.b16 %v511
    %v879 = vunpack.c.h.b16 %v511
    %v880 = vunpack.c.l.b16 %v512
    %v881 = vunpack.c.h.b16 %v512
    %v882 = vunpack.c.l.b16 %v513
    %v883 = vunpack.c.h.b16 %v513
    %v884 = vunpack.c.l.b16 %v514
    %v885 = vunpack.c.h.b16 %v514
    %v886 = vunpack.c.l.b16 %v515
    %v887 = vunpack.c.h.b16 %v515
    %v888 = vunpack.c.l.b16 %v516
    %v889 = vunpack.c.h.b16 %v516
    %v890 = vunpack.c.l.b16 %v517
    %v891 = vunpack.c.h.b16 %v517
    %v892 = vunpack.c.l.b16 %v518
    %v893 = vunpack.c.h.b16 %v518
    %v894 = vunpack.c.l.b16 %v519
    %v895 = vunpack.c.h.b16 %v519
    %v896 = vunpack.c.l.b16 %v520
    %v897 = vunpack.c.h.b16 %v520
    %v898 = vunpack.c.l.b16 %v521
    %v899 = vunpack.c.h.b16 %v521
    %v900 = vunpack.c.l.b16 %v522
    %v901 = vunpack.c.h.b16 %v522
    %v902 = vunpack.c.l.b16 %v523
    %v903 = vunpack.c.h.b16 %v523
    %v904 = vunpack.c.l.b16 %v524
    %v905 = vunpack.c.h.b16 %v524
    %v906 = vunpack.c.l.b16 %v525
    %v907 = vunpack.c.h.b16 %v525
    %v908 = vunpack.c.l.b16 %v526
    %v909 = vunpack.c.h.b16 %v526
    %v910 = vunpack.c.l.b16 %v527
    %v911 = vunpack.c.h.b16 %v527
    %v912 = vunpack.c.l.b16 %v528
    %v913 = vunpack.c.h.b16 %v528
    %v914 = vunpack.c.l.b16 %v529
    %v915 = vunpack.c.h.b16 %v529
    %v916 = vunpack.c.l.b16 %v530
    %v917 = vunpack.c.h.b16 %v530
    %v918 = vunpack.c.l.b16 %v531
    %v919 = vunpack.c.h.b16 %v531
    %v920 = vunpack.c.l.b16 %v532
    %v921 = vunpack.c.h.b16 %v532
    %v922 = vunpack.c.l.b16 %v533
    %v923 = vunpack.c.h.b16 %v533
    %v924 = vunpack.c.l.b16 %v534
    %v925 = vunpack.c.h.b16 %v534
    %v926 = vunpack.c.l.b16 %v535
    %v927 = vunpack.c.h.b16 %v535
    %v928 = vunpack.c.l.b16 %v536
    %v929 = vunpack.c.h.b16 %v536
    %v930 = vunpack.c.l.b16 %v537
    %v931 = vunpack.c.h.b16 %v537
    %v932 = vunpack.c.l.b16 %v538
    %v933 = vunpack.c.h.b16 %v538
    %v934 = vunpack.c.l.b16 %v539
    %v935 = vunpack.c.h.b16 %v539
    %v936 = vunpack.c.l.b16 %v540
    %v937 = vunpack.c.h.b16 %v540
    %v938 = vunpack.c.l.b16 %v541
    %v939 = vunpack.c.h.b16 %v541
    %v940 = vunpack.c.l.b16 %v542
    %v941 = vunpack.c.h.b16 %v542
    %v942 = vunpack.c.l.b16 %v543
    %v943 = vunpack.c.h.b16 %v543
    %v944 = vunpack.c.l.b16 %v544
    %v945 = vunpack.c.h.b16 %v544
    %v946 = vunpack.c.l.b16 %v545
    %v947 = vunpack.c.h.b16 %v545
    %v948 = vunpack.c.l.b16 %v546
    %v949 = vunpack.c.h.b16 %v546
    %v950 = vunpack.c.l.b16 %v547
    %v951 = vunpack.c.h.b16 %v547
    %v952 = vunpack.c.l.b16 %v548
    %v953 = vunpack.c.h.b16 %v548
    %v954 = vunpack.c.l.b16 %v549
    %v955 = vunpack.c.h.b16 %v549
    %v956 = vpack.c.b16 %v704, %v700
    %v957 = vpack.c.b16 %v705, %v701
    %v958 = vpack.c.b16 %v706, %v702
    %v959 = vpack.c.b16 %v707, %v703
    %v960 = vpack.c.b16 %v712, %v708
    %v961 = vpack.c.b16 %v713, %v709
    %v962 = vpack.c.b16 %v714, %v710
    %v963 = vpack.c.b16 %v715, %v711
    %v964 = vpack.c.b16 %v720, %v716
    %v965 = vpack.c.b16 %v721, %v717
    %v966 = vpack.c.b16 %v722, %v718
    %v967 = vpack.c.b16 %v723, %v719
    %v968 = vpack.c.b16 %v728, %v724
    %v969 = vpack.c.b16 %v729, %v725
    %v970 = vpack.c.b16 %v730, %v726
    %v971 = vpack.c.b16 %v731, %v727
    %v972 = vpack.c.b16 %v736, %v732
    %v973 = vpack.c.b16 %v737, %v733
    %v974 = vpack.c.b16 %v738, %v734
    %v975 = vpack.c.b16 %v739, %v735
    %v976 = vpack.c.b16 %v744, %v740
    %v977 = vpack.c.b16 %v745, %v741
    %v978 = vpack.c.b16 %v746, %v742
    %v979 = vpack.c.b16 %v747, %v743
    %v980 = vpack.c.b16 %v752, %v748
    %v981 = vpack.c.b16 %v753, %v749
    %v982 = vpack.c.b16 %v754, %v750
    %v983 = vpack.c.b16 %v755, %v751
    %v984 = vpack.c.b16 %v760, %v756
    %v985 = vpack.c.b16 %v761, %v757
    %v986 = vpack.c.b16 %v762, %v758
    %v987 = vpack.c.b16 %v763, %v759
    %v988 = vpack.c.b16 %v768, %v764
    %v989 = vpack.c.b16 %v769, %v765
    %v990 = vpack.c.b16 %v770, %v766
    %v991 = vpack.c.b16 %v771, %v767
    %v992 = vpack.c.b16 %v776, %v772
    %v993 = vpack.c.b16 %v777, %v773
    %v994 = vpack.c.b16 %v778, %v774
    %v995 = vpack.c.b16 %v779, %v775
    %v996 = vpack.c.b16 %v784, %v780
    %v997 = vpack.c.b16 %v785, %v781
    %v998 = vpack.c.b16 %v786, %v782
    %v999 = vpack.c.b16 %v787, %v783
    %v1000 = vpack.c.b16 %v792, %v788
    %v1001 = vpack.c.b16 %v793, %v789
    %v1002 = vpack.c.b16 %v794, %v790
    %v1003 = vpack.c.b16 %v795, %v791
    %v1004 = vpack.c.b16 %v800, %v796
    %v1005 = vpack.c.b16 %v801, %v797
    %v1006 = vpack.c.b16 %v802, %v798
    %v1007 = vpack.c.b16 %v803, %v799
    %v1008 = vpack.c.b16 %v808, %v804
    %v1009 = vpack.c.b16 %v809, %v805
    %v1010 = vpack.c.b16 %v810, %v806
    %v1011 = vpack.c.b16 %v811, %v807
    %v1012 = vpack.c.b16 %v816, %v812
    %v1013 = vpack.c.b16 %v817, %v813
    %v1014 = vpack.c.b16 %v818, %v814
    %v1015 = vpack.c.b16 %v819, %v815
    %v1016 = vpack.c.b16 %v824, %v820
    %v1017 = vpack.c.b16 %v825, %v821
    %v1018 = vpack.c.b16 %v826, %v822
    %v1019 = vpack.c.b16 %v827, %v823
    %v1020 = vpack.c.b16 %v832, %v828
    %v1021 = vpack.c.b16 %v833, %v829
    %v1022 = vpack.c.b16 %v834, %v830
    %v1023 = vpack.c.b16 %v835, %v831
    %v1024 = vpack.c.b16 %v840, %v836
    %v1025 = vpack.c.b16 %v841, %v837
    %v1026 = vpack.c.b16 %v842, %v838
    %v1027 = vpack.c.b16 %v843, %v839
    %v1028 = vpack.c.b16 %v848, %v844
    %v1029 = vpack.c.b16 %v849, %v845
    %v1030 = vpack.c.b16 %v850, %v846
    %v1031 = vpack.c.b16 %v851, %v847
    %v1032 = vpack.c.b16 %v856, %v852
    %v1033 = vpack.c.b16 %v857, %v853
    %v1034 = vpack.c.b16 %v858, %v854
    %v1035 = vpack.c.b16 %v859, %v855
    %v1036 = vpack.c.b16 %v864, %v860
    %v1037 = vpack.c.b16 %v865, %v861
    %v1038 = vpack.c.b16 %v866, %v862
    %v1039 = vpack.c.b16 %v867, %v863
    %v1040 = vpack.c.b16 %v872, %v868
    %v1041 = vpack.c.b16 %v873, %v869
    %v1042 = vpack.c.b16 %v874, %v870
    %v1043 = vpack.c.b16 %v875, %v871
    %v1044 = vpack.c.b16 %v880, %v876
    %v1045 = vpack.c.b16 %v881, %v877
    %v1046 = vpack.c.b16 %v882, %v878
    %v1047 = vpack.c.b16 %v883, %v879
    %v1048 = vpack.c.b16 %v888, %v884
    %v1049 = vpack.c.b16 %v889, %v885
    %v1050 = vpack.c.b16 %v890, %v886
    %v1051 = vpack.c.b16 %v891, %v887
    %v1052 = vpack.c.b16 %v896, %v892
    %v1053 = vpack.c.b16 %v897, %v893
    %v1054 = vpack.c.b16 %v898, %v894
    %v1055 = vpack.c.b16 %v899, %v895
    %v1056 = vpack.c.b16 %v904, %v900
    %v1057 = vpack.c.b16 %v905, %v901
    %v1058 = vpack.c.b16 %v906, %v902
    %v1059 = vpack.c.b16 %v907, %v903
    %v1060 = vpack.c.b16 %v912, %v908
    %v1061 = vpack.c.b16 %v913, %v909
    %v1062 = vpack.c.b16 %v914, %v910
    %v1063 = vpack.c.b16 %v915, %v911
    %v1064 = vpack.c.b16 %v920, %v916
    %v1065 = vpack.c.b16 %v921, %v917
    %v1066 = vpack.c.b16 %v922, %v918
    %v1067 = vpack.c.b16 %v923, %v919
    %v1068 = vpack.c.b16 %v928, %v924
    %v1069 = vpack.c.b16 %v929, %v925
    %v1070 = vpack.c.b16 %v930, %v926
    %v1071 = vpack.c.b16 %v931, %v927
    %v1072 = vpack.c.b16 %v936, %v932
    %v1073 = vpack.c.b16 %v937, %v933
    %v1074 = vpack.c.b16 %v938, %v934
    %v1075 = vpack.c.b16 %v939, %v935
    %v1076 = vpack.c.b16 %v944, %v940
    %v1077 = vpack.c.b16 %v945, %v941
    %v1078 = vpack.c.b16 %v946, %v942
    %v1079 = vpack.c.b16 %v947, %v943
    %v1080 = vpack.c.b16 %v952, %v948
    %v1081 = vpack.c.b16 %v953, %v949
    %v1082 = vpack.c.b16 %v954, %v950
    %v1083 = vpack.c.b16 %v955, %v951
    %1212 = vmatprep.subr.bf16.mxu0 %v957
    %1213 = vmatpush1.bf16.msra.mxu0 %v956
    %1214 = vmatprep.subr.bf16.mxu0 %v961
    %1215 = vmatpush1.bf16.msra.mxu0 %v960
    %1216 = vmatprep.subr.bf16.mxu0 %v965
    %1217 = vmatpush1.bf16.msra.mxu0 %v964
    %1218 = vmatprep.subr.bf16.mxu0 %v969
    %1219 = vmatpush1.bf16.msra.mxu0 %v968
    %1220 = vmatprep.subr.bf16.mxu0 %v973
    %1221 = vmatpush1.bf16.msra.mxu0 %v972
    %1222 = vmatprep.subr.bf16.mxu0 %v977
    %1223 = vmatpush1.bf16.msra.mxu0 %v976
    %1224 = vmatprep.subr.bf16.mxu0 %v981
    %1225 = vmatpush1.bf16.msra.mxu0 %v980
    %1226 = vmatprep.subr.bf16.mxu0 %v985
    %1227 = vmatpush1.bf16.msra.mxu0 %v984
    %1228 = vmatprep.subr.bf16.mxu0 %v989
    %1229 = vmatpush1.bf16.msra.mxu0 %v988
    %1230 = vmatprep.subr.bf16.mxu0 %v993
    %1231 = vmatpush1.bf16.msra.mxu0 %v992
    %1232 = vmatprep.subr.bf16.mxu0 %v997
    %1233 = vmatpush1.bf16.msra.mxu0 %v996
    %1234 = vmatprep.subr.bf16.mxu0 %v1001
    %1235 = vmatpush1.bf16.msra.mxu0 %v1000
    %1236 = vmatprep.subr.bf16.mxu0 %v1005
    %1237 = vmatpush1.bf16.msra.mxu0 %v1004
    %1238 = vmatprep.subr.bf16.mxu0 %v1009
    %1239 = vmatpush1.bf16.msra.mxu0 %v1008
    %1240 = vmatprep.subr.bf16.mxu0 %v1013
    %1241 = vmatpush1.bf16.msra.mxu0 %v1012
    %1242 = vmatprep.subr.bf16.mxu0 %v1017
    %1243 = vmatpush1.bf16.msra.mxu0 %v1016
    %1244 = vmatprep.mubr.bf16.mxu0 %v419
    %1245 = vmatmul.mubr.bf16.gmra.mrb[0].mxu0 %v418
    %v1246 = vpop.f32.mrb[0].mxu0
    %v1247 = vadd.f32 %v555, %v1246
    %v1248 = vpop.f32.mrb[0].mxu0
    %v1249 = vadd.f32 %v559, %v1248
    %v1250 = vpop.f32.mrb[0].mxu0
    %v1251 = vadd.f32 %v555, %v1250
    %v1252 = vpop.f32.mrb[0].mxu0
    %v1253 = vadd.f32 %v559, %v1252
    %1254 = vdwg.mxu0
    %1255 = vmatprep.subr.bf16.mxu0 %v1021
    %1256 = vmatpush1.bf16.msra.mxu0 %v1020
    %1257 = vmatprep.subr.bf16.mxu0 %v1025
    %1258 = vmatpush1.bf16.msra.mxu0 %v1024
    %1259 = vmatprep.subr.bf16.mxu0 %v1029
    %1260 = vmatpush1.bf16.msra.mxu0 %v1028
    %1261 = vmatprep.subr.bf16.mxu0 %v1033
    %1262 = vmatpush1.bf16.msra.mxu0 %v1032
    %1263 = vmatprep.subr.bf16.mxu0 %v1037
    %1264 = vmatpush1.bf16.msra.mxu0 %v1036
    %1265 = vmatprep.subr.bf16.mxu0 %v1041
    %1266 = vmatpush1.bf16.msra.mxu0 %v1040
    %1267 = vmatprep.subr.bf16.mxu0 %v1045
    %1268 = vmatpush1.bf16.msra.mxu0 %v1044
    %1269 = vmatprep.subr.bf16.mxu0 %v1049
    %1270 = vmatpush1.bf16.msra.mxu0 %v1048
    %1271 = vmatprep.subr.bf16.mxu0 %v1053
    %1272 = vmatpush1.bf16.msra.mxu0 %v1052
    %1273 = vmatprep.subr.bf16.mxu0 %v1057
    %1274 = vmatpush1.bf16.msra.mxu0 %v1056
    %1275 = vmatprep.subr.bf16.mxu0 %v1061
    %1276 = vmatpush1.bf16.msra.mxu0 %v1060
    %1277 = vmatprep.subr.bf16.mxu0 %v1065
    %1278 = vmatpush1.bf16.msra.mxu0 %v1064
    %1279 = vmatprep.subr.bf16.mxu0 %v1069
    %1280 = vmatpush1.bf16.msra.mxu0 %v1068
    %1281 = vmatprep.subr.bf16.mxu0 %v1073
    %1282 = vmatpush1.bf16.msra.mxu0 %v1072
    %1283 = vmatprep.subr.bf16.mxu0 %v1077
    %1284 = vmatpush1.bf16.msra.mxu0 %v1076
    %1285 = vmatprep.subr.bf16.mxu0 %v1081
    %1286 = vmatpush1.bf16.msra.mxu0 %v1080
    %1287 = vmatprep.mubr.bf16.mxu0 %v421
    %1288 = vmatmul.mubr.bf16.gmra.mrb[0].mxu0 %v420
    %v1289 = vpop.f32.mrb[0].mxu0
    %v1290 = vadd.f32 %v1247, %v1289
    %v1291 = vpop.f32.mrb[0].mxu0
    %v1292 = vadd.f32 %v1249, %v1291
    %v1293 = vpop.f32.mrb[0].mxu0
    %v1294 = vadd.f32 %v1251, %v1293
    %v1295 = vpop.f32.mrb[0].mxu0
    %v1296 = vadd.f32 %v1253, %v1295
    %1297 = vdwg.mxu0
    %1298 = vmatprep.subr.bf16.mxu0 %v959
    %1299 = vmatpush1.bf16.msra.mxu0 %v958
    %1300 = vmatprep.subr.bf16.mxu0 %v963
    %1301 = vmatpush1.bf16.msra.mxu0 %v962
    %1302 = vmatprep.subr.bf16.mxu0 %v967
    %1303 = vmatpush1.bf16.msra.mxu0 %v966
    %1304 = vmatprep.subr.bf16.mxu0 %v971
    %1305 = vmatpush1.bf16.msra.mxu0 %v970
    %1306 = vmatprep.subr.bf16.mxu0 %v975
    %1307 = vmatpush1.bf16.msra.mxu0 %v974
    %1308 = vmatprep.subr.bf16.mxu0 %v979
    %1309 = vmatpush1.bf16.msra.mxu0 %v978
    %1310 = vmatprep.subr.bf16.mxu0 %v983
    %1311 = vmatpush1.bf16.msra.mxu0 %v982
    %1312 = vmatprep.subr.bf16.mxu0 %v987
    %1313 = vmatpush1.bf16.msra.mxu0 %v986
    %1314 = vmatprep.subr.bf16.mxu0 %v991
    %1315 = vmatpush1.bf16.msra.mxu0 %v990
    %1316 = vmatprep.subr.bf16.mxu0 %v995
    %1317 = vmatpush1.bf16.msra.mxu0 %v994
    %1318 = vmatprep.subr.bf16.mxu0 %v999
    %1319 = vmatpush1.bf16.msra.mxu0 %v998
    %1320 = vmatprep.subr.bf16.mxu0 %v1003
    %1321 = vmatpush1.bf16.msra.mxu0 %v1002
    %1322 = vmatprep.subr.bf16.mxu0 %v1007
    %1323 = vmatpush1.bf16.msra.mxu0 %v1006
    %1324 = vmatprep.subr.bf16.mxu0 %v1011
    %1325 = vmatpush1.bf16.msra.mxu0 %v1010
    %1326 = vmatprep.subr.bf16.mxu0 %v1015
    %1327 = vmatpush1.bf16.msra.mxu0 %v1014
    %1328 = vmatprep.subr.bf16.mxu0 %v1019
    %1329 = vmatpush1.bf16.msra.mxu0 %v1018
    %1330 = vmatprep.mubr.bf16.mxu0 %v419
    %1331 = vmatmul.mubr.bf16.gmra.mrb[0].mxu0 %v418
    %v1332 = vpop.f32.mrb[0].mxu0
    %v1333 = vadd.f32 %v563, %v1332
    %v1334 = vpop.f32.mrb[0].mxu0
    %v1335 = vadd.f32 %v567, %v1334
    %v1336 = vpop.f32.mrb[0].mxu0
    %v1337 = vadd.f32 %v563, %v1336
    %v1338 = vpop.f32.mrb[0].mxu0
    %v1339 = vadd.f32 %v567, %v1338
    %1340 = vdwg.mxu0
    %1341 = vmatprep.subr.bf16.mxu0 %v1023
    %1342 = vmatpush1.bf16.msra.mxu0 %v1022
    %1343 = vmatprep.subr.bf16.mxu0 %v1027
    %1344 = vmatpush1.bf16.msra.mxu0 %v1026
    %1345 = vmatprep.subr.bf16.mxu0 %v1031
    %1346 = vmatpush1.bf16.msra.mxu0 %v1030
    %1347 = vmatprep.subr.bf16.mxu0 %v1035
    %1348 = vmatpush1.bf16.msra.mxu0 %v1034
    %1349 = vmatprep.subr.bf16.mxu0 %v1039
    %1350 = vmatpush1.bf16.msra.mxu0 %v1038
    %1351 = vmatprep.subr.bf16.mxu0 %v1043
    %1352 = vmatpush1.bf16.msra.mxu0 %v1042
    %1353 = vmatprep.subr.bf16.mxu0 %v1047
    %1354 = vmatpush1.bf16.msra.mxu0 %v1046
    %1355 = vmatprep.subr.bf16.mxu0 %v1051
    %1356 = vmatpush1.bf16.msra.mxu0 %v1050
    %1357 = vmatprep.subr.bf16.mxu0 %v1055
    %1358 = vmatpush1.bf16.msra.mxu0 %v1054
    %1359 = vmatprep.subr.bf16.mxu0 %v1059
    %1360 = vmatpush1.bf16.msra.mxu0 %v1058
    %1361 = vmatprep.subr.bf16.mxu0 %v1063
    %1362 = vmatpush1.bf16.msra.mxu0 %v1062
    %1363 = vmatprep.subr.bf16.mxu0 %v1067
    %1364 = vmatpush1.bf16.msra.mxu0 %v1066
    %1365 = vmatprep.subr.bf16.mxu0 %v1071
    %1366 = vmatpush1.bf16.msra.mxu0 %v1070
    %1367 = vmatprep.subr.bf16.mxu0 %v1075
    %1368 = vmatpush1.bf16.msra.mxu0 %v1074
    %1369 = vmatprep.subr.bf16.mxu0 %v1079
    %1370 = vmatpush1.bf16.msra.mxu0 %v1078
    %1371 = vmatprep.subr.bf16.mxu0 %v1083
    %1372 = vmatpush1.bf16.msra.mxu0 %v1082
    %1373 = vmatprep.mubr.bf16.mxu0 %v421
    %1374 = vmatmul.mubr.bf16.gmra.mrb[0].mxu0 %v420
    %v1375 = vpop.f32.mrb[0].mxu0
    %v1376 = vadd.f32 %v1333, %v1375
    %v1377 = vpop.f32.mrb[0].mxu0
    %v1378 = vadd.f32 %v1335, %v1377
    %v1379 = vpop.f32.mrb[0].mxu0
    %v1380 = vadd.f32 %v1337, %v1379
    %v1381 = vpop.f32.mrb[0].mxu0
    %v1382 = vadd.f32 %v1339, %v1381
    %1383 = vdwg.mxu0
    %v1384 = vmax.f32 %v1290, 0.0
    %v1385 = vmax.f32 %v1292, 0.0
    %v1386 = vmax.f32 %v1376, 0.0
    %v1387 = vmax.f32 %v1378, 0.0
    %v1388 = vmax.f32 %v1294, 0.0
    %v1389 = vmax.f32 %v1296, 0.0
    %v1390 = vmax.f32 %v1380, 0.0
    %v1391 = vmax.f32 %v1382, 0.0
    %v1392 = vpack.c.bf16 %v1388, %v1384
    %v1393 = vpack.c.bf16 %v1389, %v1385
    %v1394 = vpack.c.bf16 %v1390, %v1386
    %v1395 = vpack.c.bf16 %v1391, %v1387
    %v1396 = vld [vmem:[#allocation8] sm:$0xff]
    %v1397 = vld [vmem:[#allocation8 + $0x8] sm:$0xff]
    %v1398 = vld [vmem:[#allocation8 + $0x10] sm:$0xff]
    %v1399 = vld [vmem:[#allocation8 + $0x18] sm:$0xff]
    %v1400 = vld [vmem:[#allocation8 + $0x20] sm:$0xff]
    %v1401 = vld [vmem:[#allocation8 + $0x28] sm:$0xff]
    %v1402 = vld [vmem:[#allocation8 + $0x30] sm:$0xff]
    %v1403 = vld [vmem:[#allocation8 + $0x38] sm:$0xff]
    %v1404 = vld [vmem:[#allocation8 + $0x40] sm:$0xff]
    %v1405 = vld [vmem:[#allocation8 + $0x48] sm:$0xff]
    %v1406 = vld [vmem:[#allocation8 + $0x50] sm:$0xff]
    %v1407 = vld [vmem:[#allocation8 + $0x58] sm:$0xff]
    %v1408 = vld [vmem:[#allocation8 + $0x60] sm:$0xff]
    %v1409 = vld [vmem:[#allocation8 + $0x68] sm:$0xff]
    %v1410 = vld [vmem:[#allocation8 + $0x70] sm:$0xff]
    %v1411 = vld [vmem:[#allocation8 + $0x78] sm:$0xff]
    %v1412 = vld [vmem:[#allocation8 + $0x80] sm:$0xff]
    %v1413 = vld [vmem:[#allocation8 + $0x88] sm:$0xff]
    %v1414 = vld [vmem:[#allocation8 + $0x90] sm:$0xff]
    %v1415 = vld [vmem:[#allocation8 + $0x98] sm:$0xff]
    %v1416 = vld [vmem:[#allocation8 + $0xa0] sm:$0xff]
    %v1417 = vld [vmem:[#allocation8 + $0xa8] sm:$0xff]
    %v1418 = vld [vmem:[#allocation8 + $0xb0] sm:$0xff]
    %v1419 = vld [vmem:[#allocation8 + $0xb8] sm:$0xff]
    %v1420 = vld [vmem:[#allocation8 + $0xc0] sm:$0xff]
    %v1421 = vld [vmem:[#allocation8 + $0xc8] sm:$0xff]
    %v1422 = vld [vmem:[#allocation8 + $0xd0] sm:$0xff]
    %v1423 = vld [vmem:[#allocation8 + $0xd8] sm:$0xff]
    %v1424 = vld [vmem:[#allocation8 + $0xe0] sm:$0xff]
    %v1425 = vld [vmem:[#allocation8 + $0xe8] sm:$0xff]
    %v1426 = vld [vmem:[#allocation8 + $0xf0] sm:$0xff]
    %v1427 = vld [vmem:[#allocation8 + $0xf8] sm:$0xff]
    %v1428 = vld [vmem:[#allocation8 + $0x100] sm:$0xff]
    %v1429 = vld [vmem:[#allocation8 + $0x108] sm:$0xff]
    %v1430 = vld [vmem:[#allocation8 + $0x110] sm:$0xff]
    %v1431 = vld [vmem:[#allocation8 + $0x118] sm:$0xff]
    %v1432 = vld [vmem:[#allocation8 + $0x120] sm:$0xff]
    %v1433 = vld [vmem:[#allocation8 + $0x128] sm:$0xff]
    %v1434 = vld [vmem:[#allocation8 + $0x130] sm:$0xff]
    %v1435 = vld [vmem:[#allocation8 + $0x138] sm:$0xff]
    %v1436 = vld [vmem:[#allocation8 + $0x140] sm:$0xff]
    %v1437 = vld [vmem:[#allocation8 + $0x148] sm:$0xff]
    %v1438 = vld [vmem:[#allocation8 + $0x150] sm:$0xff]
    %v1439 = vld [vmem:[#allocation8 + $0x158] sm:$0xff]
    %v1440 = vld [vmem:[#allocation8 + $0x160] sm:$0xff]
    %v1441 = vld [vmem:[#allocation8 + $0x168] sm:$0xff]
    %v1442 = vld [vmem:[#allocation8 + $0x170] sm:$0xff]
    %v1443 = vld [vmem:[#allocation8 + $0x178] sm:$0xff]
    %v1444 = vld [vmem:[#allocation8 + $0x180] sm:$0xff]
    %v1445 = vld [vmem:[#allocation8 + $0x188] sm:$0xff]
    %v1446 = vld [vmem:[#allocation8 + $0x190] sm:$0xff]
    %v1447 = vld [vmem:[#allocation8 + $0x198] sm:$0xff]
    %v1448 = vld [vmem:[#allocation8 + $0x1a0] sm:$0xff]
    %v1449 = vld [vmem:[#allocation8 + $0x1a8] sm:$0xff]
    %v1450 = vld [vmem:[#allocation8 + $0x1b0] sm:$0xff]
    %v1451 = vld [vmem:[#allocation8 + $0x1b8] sm:$0xff]
    %v1452 = vld [vmem:[#allocation8 + $0x1c0] sm:$0xff]
    %v1453 = vld [vmem:[#allocation8 + $0x1c8] sm:$0xff]
    %v1454 = vld [vmem:[#allocation8 + $0x1d0] sm:$0xff]
    %v1455 = vld [vmem:[#allocation8 + $0x1d8] sm:$0xff]
    %v1456 = vld [vmem:[#allocation8 + $0x1e0] sm:$0xff]
    %v1457 = vld [vmem:[#allocation8 + $0x1e8] sm:$0xff]
    %v1458 = vld [vmem:[#allocation8 + $0x1f0] sm:$0xff]
    %v1459 = vld [vmem:[#allocation8 + $0x1f8] sm:$0xff]
    %v1460 = vld [vmem:[#allocation8 + $0x200] sm:$0xff]
    %v1461 = vld [vmem:[#allocation8 + $0x208] sm:$0xff]
    %v1462 = vld [vmem:[#allocation8 + $0x210] sm:$0xff]
    %v1463 = vld [vmem:[#allocation8 + $0x218] sm:$0xff]
    %v1464 = vld [vmem:[#allocation8 + $0x220] sm:$0xff]
    %v1465 = vld [vmem:[#allocation8 + $0x228] sm:$0xff]
    %v1466 = vld [vmem:[#allocation8 + $0x230] sm:$0xff]
    %v1467 = vld [vmem:[#allocation8 + $0x238] sm:$0xff]
    %v1468 = vld [vmem:[#allocation8 + $0x240] sm:$0xff]
    %v1469 = vld [vmem:[#allocation8 + $0x248] sm:$0xff]
    %v1470 = vld [vmem:[#allocation8 + $0x250] sm:$0xff]
    %v1471 = vld [vmem:[#allocation8 + $0x258] sm:$0xff]
    %v1472 = vld [vmem:[#allocation8 + $0x260] sm:$0xff]
    %v1473 = vld [vmem:[#allocation8 + $0x268] sm:$0xff]
    %v1474 = vld [vmem:[#allocation8 + $0x270] sm:$0xff]
    %v1475 = vld [vmem:[#allocation8 + $0x278] sm:$0xff]
    %v1476 = vld [vmem:[#allocation8 + $0x280] sm:$0xff]
    %v1477 = vld [vmem:[#allocation8 + $0x288] sm:$0xff]
    %v1478 = vld [vmem:[#allocation8 + $0x290] sm:$0xff]
    %v1479 = vld [vmem:[#allocation8 + $0x298] sm:$0xff]
    %v1480 = vld [vmem:[#allocation8 + $0x2a0] sm:$0xff]
    %v1481 = vld [vmem:[#allocation8 + $0x2a8] sm:$0xff]
    %v1482 = vld [vmem:[#allocation8 + $0x2b0] sm:$0xff]
    %v1483 = vld [vmem:[#allocation8 + $0x2b8] sm:$0xff]
    %v1484 = vld [vmem:[#allocation8 + $0x2c0] sm:$0xff]
    %v1485 = vld [vmem:[#allocation8 + $0x2c8] sm:$0xff]
    %v1486 = vld [vmem:[#allocation8 + $0x2d0] sm:$0xff]
    %v1487 = vld [vmem:[#allocation8 + $0x2d8] sm:$0xff]
    %v1488 = vld [vmem:[#allocation8 + $0x2e0] sm:$0xff]
    %v1489 = vld [vmem:[#allocation8 + $0x2e8] sm:$0xff]
    %v1490 = vld [vmem:[#allocation8 + $0x2f0] sm:$0xff]
    %v1491 = vld [vmem:[#allocation8 + $0x2f8] sm:$0xff]
    %v1492 = vld [vmem:[#allocation8 + $0x300] sm:$0xff]
    %v1493 = vld [vmem:[#allocation8 + $0x308] sm:$0xff]
    %v1494 = vld [vmem:[#allocation8 + $0x310] sm:$0xff]
    %v1495 = vld [vmem:[#allocation8 + $0x318] sm:$0xff]
    %v1496 = vld [vmem:[#allocation8 + $0x320] sm:$0xff]
    %v1497 = vld [vmem:[#allocation8 + $0x328] sm:$0xff]
    %v1498 = vld [vmem:[#allocation8 + $0x330] sm:$0xff]
    %v1499 = vld [vmem:[#allocation8 + $0x338] sm:$0xff]
    %v1500 = vld [vmem:[#allocation8 + $0x340] sm:$0xff]
    %v1501 = vld [vmem:[#allocation8 + $0x348] sm:$0xff]
    %v1502 = vld [vmem:[#allocation8 + $0x350] sm:$0xff]
    %v1503 = vld [vmem:[#allocation8 + $0x358] sm:$0xff]
    %v1504 = vld [vmem:[#allocation8 + $0x360] sm:$0xff]
    %v1505 = vld [vmem:[#allocation8 + $0x368] sm:$0xff]
    %v1506 = vld [vmem:[#allocation8 + $0x370] sm:$0xff]
    %v1507 = vld [vmem:[#allocation8 + $0x378] sm:$0xff]
    %v1508 = vld [vmem:[#allocation8 + $0x380] sm:$0xff]
    %v1509 = vld [vmem:[#allocation8 + $0x388] sm:$0xff]
    %v1510 = vld [vmem:[#allocation8 + $0x390] sm:$0xff]
    %v1511 = vld [vmem:[#allocation8 + $0x398] sm:$0xff]
    %v1512 = vld [vmem:[#allocation8 + $0x3a0] sm:$0xff]
    %v1513 = vld [vmem:[#allocation8 + $0x3a8] sm:$0xff]
    %v1514 = vld [vmem:[#allocation8 + $0x3b0] sm:$0xff]
    %v1515 = vld [vmem:[#allocation8 + $0x3b8] sm:$0xff]
    %v1516 = vld [vmem:[#allocation8 + $0x3c0] sm:$0xff]
    %v1517 = vld [vmem:[#allocation8 + $0x3c8] sm:$0xff]
    %v1518 = vld [vmem:[#allocation8 + $0x3d0] sm:$0xff]
    %v1519 = vld [vmem:[#allocation8 + $0x3d8] sm:$0xff]
    %v1520 = vld [vmem:[#allocation8 + $0x3e0] sm:$0xff]
    %v1521 = vld [vmem:[#allocation8 + $0x3e8] sm:$0xff]
    %v1522 = vld [vmem:[#allocation8 + $0x3f0] sm:$0xff]
    %v1523 = vld [vmem:[#allocation8 + $0x3f8] sm:$0xff]
    %v1524 = vld [vmem:[%s6] sm:$0xf]
    %v1526 = vlaneseq
    %v1527 = vshrl.u32 %v1526, 7
    %v1528 = vsub.s32 0, %v1527
    %v1529 = vrot.slane %v1524, %v1528
    %v1530 = vlaneseq
    %v1531 = vshrl.u32 %v1530, 7
    %v1532 = vsub.s32 1, %v1531
    %v1533 = vrot.slane %v1524, %v1532
    %v1534 = vlaneseq
    %v1535 = vshrl.u32 %v1534, 7
    %v1536 = vsub.s32 2, %v1535
    %v1537 = vrot.slane %v1524, %v1536
    %v1538 = vlaneseq
    %v1539 = vshrl.u32 %v1538, 7
    %v1540 = vsub.s32 3, %v1539
    %v1541 = vrot.slane %v1524, %v1540
    %v1674 = vunpack.c.l.b16 %v1396
    %v1675 = vunpack.c.h.b16 %v1396
    %v1676 = vunpack.c.l.b16 %v1397
    %v1677 = vunpack.c.h.b16 %v1397
    %v1678 = vunpack.c.l.b16 %v1398
    %v1679 = vunpack.c.h.b16 %v1398
    %v1680 = vunpack.c.l.b16 %v1399
    %v1681 = vunpack.c.h.b16 %v1399
    %v1682 = vunpack.c.l.b16 %v1400
    %v1683 = vunpack.c.h.b16 %v1400
    %v1684 = vunpack.c.l.b16 %v1401
    %v1685 = vunpack.c.h.b16 %v1401
    %v1686 = vunpack.c.l.b16 %v1402
    %v1687 = vunpack.c.h.b16 %v1402
    %v1688 = vunpack.c.l.b16 %v1403
    %v1689 = vunpack.c.h.b16 %v1403
    %v1690 = vunpack.c.l.b16 %v1404
    %v1691 = vunpack.c.h.b16 %v1404
    %v1692 = vunpack.c.l.b16 %v1405
    %v1693 = vunpack.c.h.b16 %v1405
    %v1694 = vunpack.c.l.b16 %v1406
    %v1695 = vunpack.c.h.b16 %v1406
    %v1696 = vunpack.c.l.b16 %v1407
    %v1697 = vunpack.c.h.b16 %v1407
    %v1698 = vunpack.c.l.b16 %v1408
    %v1699 = vunpack.c.h.b16 %v1408
    %v1700 = vunpack.c.l.b16 %v1409
    %v1701 = vunpack.c.h.b16 %v1409
    %v1702 = vunpack.c.l.b16 %v1410
    %v1703 = vunpack.c.h.b16 %v1410
    %v1704 = vunpack.c.l.b16 %v1411
    %v1705 = vunpack.c.h.b16 %v1411
    %v1706 = vunpack.c.l.b16 %v1412
    %v1707 = vunpack.c.h.b16 %v1412
    %v1708 = vunpack.c.l.b16 %v1413
    %v1709 = vunpack.c.h.b16 %v1413
    %v1710 = vunpack.c.l.b16 %v1414
    %v1711 = vunpack.c.h.b16 %v1414
    %v1712 = vunpack.c.l.b16 %v1415
    %v1713 = vunpack.c.h.b16 %v1415
    %v1714 = vunpack.c.l.b16 %v1416
    %v1715 = vunpack.c.h.b16 %v1416
    %v1716 = vunpack.c.l.b16 %v1417
    %v1717 = vunpack.c.h.b16 %v1417
    %v1718 = vunpack.c.l.b16 %v1418
    %v1719 = vunpack.c.h.b16 %v1418
    %v1720 = vunpack.c.l.b16 %v1419
    %v1721 = vunpack.c.h.b16 %v1419
    %v1722 = vunpack.c.l.b16 %v1420
    %v1723 = vunpack.c.h.b16 %v1420
    %v1724 = vunpack.c.l.b16 %v1421
    %v1725 = vunpack.c.h.b16 %v1421
    %v1726 = vunpack.c.l.b16 %v1422
    %v1727 = vunpack.c.h.b16 %v1422
    %v1728 = vunpack.c.l.b16 %v1423
    %v1729 = vunpack.c.h.b16 %v1423
    %v1730 = vunpack.c.l.b16 %v1424
    %v1731 = vunpack.c.h.b16 %v1424
    %v1732 = vunpack.c.l.b16 %v1425
    %v1733 = vunpack.c.h.b16 %v1425
    %v1734 = vunpack.c.l.b16 %v1426
    %v1735 = vunpack.c.h.b16 %v1426
    %v1736 = vunpack.c.l.b16 %v1427
    %v1737 = vunpack.c.h.b16 %v1427
    %v1738 = vunpack.c.l.b16 %v1428
    %v1739 = vunpack.c.h.b16 %v1428
    %v1740 = vunpack.c.l.b16 %v1429
    %v1741 = vunpack.c.h.b16 %v1429
    %v1742 = vunpack.c.l.b16 %v1430
    %v1743 = vunpack.c.h.b16 %v1430
    %v1744 = vunpack.c.l.b16 %v1431
    %v1745 = vunpack.c.h.b16 %v1431
    %v1746 = vunpack.c.l.b16 %v1432
    %v1747 = vunpack.c.h.b16 %v1432
    %v1748 = vunpack.c.l.b16 %v1433
    %v1749 = vunpack.c.h.b16 %v1433
    %v1750 = vunpack.c.l.b16 %v1434
    %v1751 = vunpack.c.h.b16 %v1434
    %v1752 = vunpack.c.l.b16 %v1435
    %v1753 = vunpack.c.h.b16 %v1435
    %v1754 = vunpack.c.l.b16 %v1436
    %v1755 = vunpack.c.h.b16 %v1436
    %v1756 = vunpack.c.l.b16 %v1437
    %v1757 = vunpack.c.h.b16 %v1437
    %v1758 = vunpack.c.l.b16 %v1438
    %v1759 = vunpack.c.h.b16 %v1438
    %v1760 = vunpack.c.l.b16 %v1439
    %v1761 = vunpack.c.h.b16 %v1439
    %v1762 = vunpack.c.l.b16 %v1440
    %v1763 = vunpack.c.h.b16 %v1440
    %v1764 = vunpack.c.l.b16 %v1441
    %v1765 = vunpack.c.h.b16 %v1441
    %v1766 = vunpack.c.l.b16 %v1442
    %v1767 = vunpack.c.h.b16 %v1442
    %v1768 = vunpack.c.l.b16 %v1443
    %v1769 = vunpack.c.h.b16 %v1443
    %v1770 = vunpack.c.l.b16 %v1444
    %v1771 = vunpack.c.h.b16 %v1444
    %v1772 = vunpack.c.l.b16 %v1445
    %v1773 = vunpack.c.h.b16 %v1445
    %v1774 = vunpack.c.l.b16 %v1446
    %v1775 = vunpack.c.h.b16 %v1446
    %v1776 = vunpack.c.l.b16 %v1447
    %v1777 = vunpack.c.h.b16 %v1447
    %v1778 = vunpack.c.l.b16 %v1448
    %v1779 = vunpack.c.h.b16 %v1448
    %v1780 = vunpack.c.l.b16 %v1449
    %v1781 = vunpack.c.h.b16 %v1449
    %v1782 = vunpack.c.l.b16 %v1450
    %v1783 = vunpack.c.h.b16 %v1450
    %v1784 = vunpack.c.l.b16 %v1451
    %v1785 = vunpack.c.h.b16 %v1451
    %v1786 = vunpack.c.l.b16 %v1452
    %v1787 = vunpack.c.h.b16 %v1452
    %v1788 = vunpack.c.l.b16 %v1453
    %v1789 = vunpack.c.h.b16 %v1453
    %v1790 = vunpack.c.l.b16 %v1454
    %v1791 = vunpack.c.h.b16 %v1454
    %v1792 = vunpack.c.l.b16 %v1455
    %v1793 = vunpack.c.h.b16 %v1455
    %v1794 = vunpack.c.l.b16 %v1456
    %v1795 = vunpack.c.h.b16 %v1456
    %v1796 = vunpack.c.l.b16 %v1457
    %v1797 = vunpack.c.h.b16 %v1457
    %v1798 = vunpack.c.l.b16 %v1458
    %v1799 = vunpack.c.h.b16 %v1458
    %v1800 = vunpack.c.l.b16 %v1459
    %v1801 = vunpack.c.h.b16 %v1459
    %v1802 = vunpack.c.l.b16 %v1460
    %v1803 = vunpack.c.h.b16 %v1460
    %v1804 = vunpack.c.l.b16 %v1461
    %v1805 = vunpack.c.h.b16 %v1461
    %v1806 = vunpack.c.l.b16 %v1462
    %v1807 = vunpack.c.h.b16 %v1462
    %v1808 = vunpack.c.l.b16 %v1463
    %v1809 = vunpack.c.h.b16 %v1463
    %v1810 = vunpack.c.l.b16 %v1464
    %v1811 = vunpack.c.h.b16 %v1464
    %v1812 = vunpack.c.l.b16 %v1465
    %v1813 = vunpack.c.h.b16 %v1465
    %v1814 = vunpack.c.l.b16 %v1466
    %v1815 = vunpack.c.h.b16 %v1466
    %v1816 = vunpack.c.l.b16 %v1467
    %v1817 = vunpack.c.h.b16 %v1467
    %v1818 = vunpack.c.l.b16 %v1468
    %v1819 = vunpack.c.h.b16 %v1468
    %v1820 = vunpack.c.l.b16 %v1469
    %v1821 = vunpack.c.h.b16 %v1469
    %v1822 = vunpack.c.l.b16 %v1470
    %v1823 = vunpack.c.h.b16 %v1470
    %v1824 = vunpack.c.l.b16 %v1471
    %v1825 = vunpack.c.h.b16 %v1471
    %v1826 = vunpack.c.l.b16 %v1472
    %v1827 = vunpack.c.h.b16 %v1472
    %v1828 = vunpack.c.l.b16 %v1473
    %v1829 = vunpack.c.h.b16 %v1473
    %v1830 = vunpack.c.l.b16 %v1474
    %v1831 = vunpack.c.h.b16 %v1474
    %v1832 = vunpack.c.l.b16 %v1475
    %v1833 = vunpack.c.h.b16 %v1475
    %v1834 = vunpack.c.l.b16 %v1476
    %v1835 = vunpack.c.h.b16 %v1476
    %v1836 = vunpack.c.l.b16 %v1477
    %v1837 = vunpack.c.h.b16 %v1477
    %v1838 = vunpack.c.l.b16 %v1478
    %v1839 = vunpack.c.h.b16 %v1478
    %v1840 = vunpack.c.l.b16 %v1479
    %v1841 = vunpack.c.h.b16 %v1479
    %v1842 = vunpack.c.l.b16 %v1480
    %v1843 = vunpack.c.h.b16 %v1480
    %v1844 = vunpack.c.l.b16 %v1481
    %v1845 = vunpack.c.h.b16 %v1481
    %v1846 = vunpack.c.l.b16 %v1482
    %v1847 = vunpack.c.h.b16 %v1482
    %v1848 = vunpack.c.l.b16 %v1483
    %v1849 = vunpack.c.h.b16 %v1483
    %v1850 = vunpack.c.l.b16 %v1484
    %v1851 = vunpack.c.h.b16 %v1484
    %v1852 = vunpack.c.l.b16 %v1485
    %v1853 = vunpack.c.h.b16 %v1485
    %v1854 = vunpack.c.l.b16 %v1486
    %v1855 = vunpack.c.h.b16 %v1486
    %v1856 = vunpack.c.l.b16 %v1487
    %v1857 = vunpack.c.h.b16 %v1487
    %v1858 = vunpack.c.l.b16 %v1488
    %v1859 = vunpack.c.h.b16 %v1488
    %v1860 = vunpack.c.l.b16 %v1489
    %v1861 = vunpack.c.h.b16 %v1489
    %v1862 = vunpack.c.l.b16 %v1490
    %v1863 = vunpack.c.h.b16 %v1490
    %v1864 = vunpack.c.l.b16 %v1491
    %v1865 = vunpack.c.h.b16 %v1491
    %v1866 = vunpack.c.l.b16 %v1492
    %v1867 = vunpack.c.h.b16 %v1492
    %v1868 = vunpack.c.l.b16 %v1493
    %v1869 = vunpack.c.h.b16 %v1493
    %v1870 = vunpack.c.l.b16 %v1494
    %v1871 = vunpack.c.h.b16 %v1494
    %v1872 = vunpack.c.l.b16 %v1495
    %v1873 = vunpack.c.h.b16 %v1495
    %v1874 = vunpack.c.l.b16 %v1496
    %v1875 = vunpack.c.h.b16 %v1496
    %v1876 = vunpack.c.l.b16 %v1497
    %v1877 = vunpack.c.h.b16 %v1497
    %v1878 = vunpack.c.l.b16 %v1498
    %v1879 = vunpack.c.h.b16 %v1498
    %v1880 = vunpack.c.l.b16 %v1499
    %v1881 = vunpack.c.h.b16 %v1499
    %v1882 = vunpack.c.l.b16 %v1500
    %v1883 = vunpack.c.h.b16 %v1500
    %v1884 = vunpack.c.l.b16 %v1501
    %v1885 = vunpack.c.h.b16 %v1501
    %v1886 = vunpack.c.l.b16 %v1502
    %v1887 = vunpack.c.h.b16 %v1502
    %v1888 = vunpack.c.l.b16 %v1503
    %v1889 = vunpack.c.h.b16 %v1503
    %v1890 = vunpack.c.l.b16 %v1504
    %v1891 = vunpack.c.h.b16 %v1504
    %v1892 = vunpack.c.l.b16 %v1505
    %v1893 = vunpack.c.h.b16 %v1505
    %v1894 = vunpack.c.l.b16 %v1506
    %v1895 = vunpack.c.h.b16 %v1506
    %v1896 = vunpack.c.l.b16 %v1507
    %v1897 = vunpack.c.h.b16 %v1507
    %v1898 = vunpack.c.l.b16 %v1508
    %v1899 = vunpack.c.h.b16 %v1508
    %v1900 = vunpack.c.l.b16 %v1509
    %v1901 = vunpack.c.h.b16 %v1509
    %v1902 = vunpack.c.l.b16 %v1510
    %v1903 = vunpack.c.h.b16 %v1510
    %v1904 = vunpack.c.l.b16 %v1511
    %v1905 = vunpack.c.h.b16 %v1511
    %v1906 = vunpack.c.l.b16 %v1512
    %v1907 = vunpack.c.h.b16 %v1512
    %v1908 = vunpack.c.l.b16 %v1513
    %v1909 = vunpack.c.h.b16 %v1513
    %v1910 = vunpack.c.l.b16 %v1514
    %v1911 = vunpack.c.h.b16 %v1514
    %v1912 = vunpack.c.l.b16 %v1515
    %v1913 = vunpack.c.h.b16 %v1515
    %v1914 = vunpack.c.l.b16 %v1516
    %v1915 = vunpack.c.h.b16 %v1516
    %v1916 = vunpack.c.l.b16 %v1517
    %v1917 = vunpack.c.h.b16 %v1517
    %v1918 = vunpack.c.l.b16 %v1518
    %v1919 = vunpack.c.h.b16 %v1518
    %v1920 = vunpack.c.l.b16 %v1519
    %v1921 = vunpack.c.h.b16 %v1519
    %v1922 = vunpack.c.l.b16 %v1520
    %v1923 = vunpack.c.h.b16 %v1520
    %v1924 = vunpack.c.l.b16 %v1521
    %v1925 = vunpack.c.h.b16 %v1521
    %v1926 = vunpack.c.l.b16 %v1522
    %v1927 = vunpack.c.h.b16 %v1522
    %v1928 = vunpack.c.l.b16 %v1523
    %v1929 = vunpack.c.h.b16 %v1523
    %v1930 = vpack.c.b16 %v1678, %v1674
    %v1931 = vpack.c.b16 %v1679, %v1675
    %v1932 = vpack.c.b16 %v1680, %v1676
    %v1933 = vpack.c.b16 %v1681, %v1677
    %v1934 = vpack.c.b16 %v1686, %v1682
    %v1935 = vpack.c.b16 %v1687, %v1683
    %v1936 = vpack.c.b16 %v1688, %v1684
    %v1937 = vpack.c.b16 %v1689, %v1685
    %v1938 = vpack.c.b16 %v1694, %v1690
    %v1939 = vpack.c.b16 %v1695, %v1691
    %v1940 = vpack.c.b16 %v1696, %v1692
    %v1941 = vpack.c.b16 %v1697, %v1693
    %v1942 = vpack.c.b16 %v1702, %v1698
    %v1943 = vpack.c.b16 %v1703, %v1699
    %v1944 = vpack.c.b16 %v1704, %v1700
    %v1945 = vpack.c.b16 %v1705, %v1701
    %v1946 = vpack.c.b16 %v1710, %v1706
    %v1947 = vpack.c.b16 %v1711, %v1707
    %v1948 = vpack.c.b16 %v1712, %v1708
    %v1949 = vpack.c.b16 %v1713, %v1709
    %v1950 = vpack.c.b16 %v1718, %v1714
    %v1951 = vpack.c.b16 %v1719, %v1715
    %v1952 = vpack.c.b16 %v1720, %v1716
    %v1953 = vpack.c.b16 %v1721, %v1717
    %v1954 = vpack.c.b16 %v1726, %v1722
    %v1955 = vpack.c.b16 %v1727, %v1723
    %v1956 = vpack.c.b16 %v1728, %v1724
    %v1957 = vpack.c.b16 %v1729, %v1725
    %v1958 = vpack.c.b16 %v1734, %v1730
    %v1959 = vpack.c.b16 %v1735, %v1731
    %v1960 = vpack.c.b16 %v1736, %v1732
    %v1961 = vpack.c.b16 %v1737, %v1733
    %v1962 = vpack.c.b16 %v1742, %v1738
    %v1963 = vpack.c.b16 %v1743, %v1739
    %v1964 = vpack.c.b16 %v1744, %v1740
    %v1965 = vpack.c.b16 %v1745, %v1741
    %v1966 = vpack.c.b16 %v1750, %v1746
    %v1967 = vpack.c.b16 %v1751, %v1747
    %v1968 = vpack.c.b16 %v1752, %v1748
    %v1969 = vpack.c.b16 %v1753, %v1749
    %v1970 = vpack.c.b16 %v1758, %v1754
    %v1971 = vpack.c.b16 %v1759, %v1755
    %v1972 = vpack.c.b16 %v1760, %v1756
    %v1973 = vpack.c.b16 %v1761, %v1757
    %v1974 = vpack.c.b16 %v1766, %v1762
    %v1975 = vpack.c.b16 %v1767, %v1763
    %v1976 = vpack.c.b16 %v1768, %v1764
    %v1977 = vpack.c.b16 %v1769, %v1765
    %v1978 = vpack.c.b16 %v1774, %v1770
    %v1979 = vpack.c.b16 %v1775, %v1771
    %v1980 = vpack.c.b16 %v1776, %v1772
    %v1981 = vpack.c.b16 %v1777, %v1773
    %v1982 = vpack.c.b16 %v1782, %v1778
    %v1983 = vpack.c.b16 %v1783, %v1779
    %v1984 = vpack.c.b16 %v1784, %v1780
    %v1985 = vpack.c.b16 %v1785, %v1781
    %v1986 = vpack.c.b16 %v1790, %v1786
    %v1987 = vpack.c.b16 %v1791, %v1787
    %v1988 = vpack.c.b16 %v1792, %v1788
    %v1989 = vpack.c.b16 %v1793, %v1789
    %v1990 = vpack.c.b16 %v1798, %v1794
    %v1991 = vpack.c.b16 %v1799, %v1795
    %v1992 = vpack.c.b16 %v1800, %v1796
    %v1993 = vpack.c.b16 %v1801, %v1797
    %v1994 = vpack.c.b16 %v1806, %v1802
    %v1995 = vpack.c.b16 %v1807, %v1803
    %v1996 = vpack.c.b16 %v1808, %v1804
    %v1997 = vpack.c.b16 %v1809, %v1805
    %v1998 = vpack.c.b16 %v1814, %v1810
    %v1999 = vpack.c.b16 %v1815, %v1811
    %v2000 = vpack.c.b16 %v1816, %v1812
    %v2001 = vpack.c.b16 %v1817, %v1813
    %v2002 = vpack.c.b16 %v1822, %v1818
    %v2003 = vpack.c.b16 %v1823, %v1819
    %v2004 = vpack.c.b16 %v1824, %v1820
    %v2005 = vpack.c.b16 %v1825, %v1821
    %v2006 = vpack.c.b16 %v1830, %v1826
    %v2007 = vpack.c.b16 %v1831, %v1827
    %v2008 = vpack.c.b16 %v1832, %v1828
    %v2009 = vpack.c.b16 %v1833, %v1829
    %v2010 = vpack.c.b16 %v1838, %v1834
    %v2011 = vpack.c.b16 %v1839, %v1835
    %v2012 = vpack.c.b16 %v1840, %v1836
    %v2013 = vpack.c.b16 %v1841, %v1837
    %v2014 = vpack.c.b16 %v1846, %v1842
    %v2015 = vpack.c.b16 %v1847, %v1843
    %v2016 = vpack.c.b16 %v1848, %v1844
    %v2017 = vpack.c.b16 %v1849, %v1845
    %v2018 = vpack.c.b16 %v1854, %v1850
    %v2019 = vpack.c.b16 %v1855, %v1851
    %v2020 = vpack.c.b16 %v1856, %v1852
    %v2021 = vpack.c.b16 %v1857, %v1853
    %v2022 = vpack.c.b16 %v1862, %v1858
    %v2023 = vpack.c.b16 %v1863, %v1859
    %v2024 = vpack.c.b16 %v1864, %v1860
    %v2025 = vpack.c.b16 %v1865, %v1861
    %v2026 = vpack.c.b16 %v1870, %v1866
    %v2027 = vpack.c.b16 %v1871, %v1867
    %v2028 = vpack.c.b16 %v1872, %v1868
    %v2029 = vpack.c.b16 %v1873, %v1869
    %v2030 = vpack.c.b16 %v1878, %v1874
    %v2031 = vpack.c.b16 %v1879, %v1875
    %v2032 = vpack.c.b16 %v1880, %v1876
    %v2033 = vpack.c.b16 %v1881, %v1877
    %v2034 = vpack.c.b16 %v1886, %v1882
    %v2035 = vpack.c.b16 %v1887, %v1883
    %v2036 = vpack.c.b16 %v1888, %v1884
    %v2037 = vpack.c.b16 %v1889, %v1885
    %v2038 = vpack.c.b16 %v1894, %v1890
    %v2039 = vpack.c.b16 %v1895, %v1891
    %v2040 = vpack.c.b16 %v1896, %v1892
    %v2041 = vpack.c.b16 %v1897, %v1893
    %v2042 = vpack.c.b16 %v1902, %v1898
    %v2043 = vpack.c.b16 %v1903, %v1899
    %v2044 = vpack.c.b16 %v1904, %v1900
    %v2045 = vpack.c.b16 %v1905, %v1901
    %v2046 = vpack.c.b16 %v1910, %v1906
    %v2047 = vpack.c.b16 %v1911, %v1907
    %v2048 = vpack.c.b16 %v1912, %v1908
    %v2049 = vpack.c.b16 %v1913, %v1909
    %v2050 = vpack.c.b16 %v1918, %v1914
    %v2051 = vpack.c.b16 %v1919, %v1915
    %v2052 = vpack.c.b16 %v1920, %v1916
    %v2053 = vpack.c.b16 %v1921, %v1917
    %v2054 = vpack.c.b16 %v1926, %v1922
    %v2055 = vpack.c.b16 %v1927, %v1923
    %v2056 = vpack.c.b16 %v1928, %v1924
    %v2057 = vpack.c.b16 %v1929, %v1925
    %2186 = vmatprep.subr.bf16.mxu0 %v1931
    %2187 = vmatpush1.bf16.msra.mxu0 %v1930
    %2188 = vmatprep.subr.bf16.mxu0 %v1935
    %2189 = vmatpush1.bf16.msra.mxu0 %v1934
    %2190 = vmatprep.subr.bf16.mxu0 %v1939
    %2191 = vmatpush1.bf16.msra.mxu0 %v1938
    %2192 = vmatprep.subr.bf16.mxu0 %v1943
    %2193 = vmatpush1.bf16.msra.mxu0 %v1942
    %2194 = vmatprep.subr.bf16.mxu0 %v1947
    %2195 = vmatpush1.bf16.msra.mxu0 %v1946
    %2196 = vmatprep.subr.bf16.mxu0 %v1951
    %2197 = vmatpush1.bf16.msra.mxu0 %v1950
    %2198 = vmatprep.subr.bf16.mxu0 %v1955
    %2199 = vmatpush1.bf16.msra.mxu0 %v1954
    %2200 = vmatprep.subr.bf16.mxu0 %v1959
    %2201 = vmatpush1.bf16.msra.mxu0 %v1958
    %2202 = vmatprep.subr.bf16.mxu0 %v1963
    %2203 = vmatpush1.bf16.msra.mxu0 %v1962
    %2204 = vmatprep.subr.bf16.mxu0 %v1967
    %2205 = vmatpush1.bf16.msra.mxu0 %v1966
    %2206 = vmatprep.subr.bf16.mxu0 %v1971
    %2207 = vmatpush1.bf16.msra.mxu0 %v1970
    %2208 = vmatprep.subr.bf16.mxu0 %v1975
    %2209 = vmatpush1.bf16.msra.mxu0 %v1974
    %2210 = vmatprep.subr.bf16.mxu0 %v1979
    %2211 = vmatpush1.bf16.msra.mxu0 %v1978
    %2212 = vmatprep.subr.bf16.mxu0 %v1983
    %2213 = vmatpush1.bf16.msra.mxu0 %v1982
    %2214 = vmatprep.subr.bf16.mxu0 %v1987
    %2215 = vmatpush1.bf16.msra.mxu0 %v1986
    %2216 = vmatprep.subr.bf16.mxu0 %v1991
    %2217 = vmatpush1.bf16.msra.mxu0 %v1990
    %2218 = vmatprep.mubr.bf16.mxu0 %v1393
    %2219 = vmatmul.mubr.bf16.gmra.mrb[0].mxu0 %v1392
    %v2220 = vpop.f32.mrb[0].mxu0
    %v2221 = vadd.f32 %v1529, %v2220
    %v2222 = vpop.f32.mrb[0].mxu0
    %v2223 = vadd.f32 %v1533, %v2222
    %v2224 = vpop.f32.mrb[0].mxu0
    %v2225 = vadd.f32 %v1529, %v2224
    %v2226 = vpop.f32.mrb[0].mxu0
    %v2227 = vadd.f32 %v1533, %v2226
    %2228 = vdwg.mxu0
    %2229 = vmatprep.subr.bf16.mxu0 %v1995
    %2230 = vmatpush1.bf16.msra.mxu0 %v1994
    %2231 = vmatprep.subr.bf16.mxu0 %v1999
    %2232 = vmatpush1.bf16.msra.mxu0 %v1998
    %2233 = vmatprep.subr.bf16.mxu0 %v2003
    %2234 = vmatpush1.bf16.msra.mxu0 %v2002
    %2235 = vmatprep.subr.bf16.mxu0 %v2007
    %2236 = vmatpush1.bf16.msra.mxu0 %v2006
    %2237 = vmatprep.subr.bf16.mxu0 %v2011
    %2238 = vmatpush1.bf16.msra.mxu0 %v2010
    %2239 = vmatprep.subr.bf16.mxu0 %v2015
    %2240 = vmatpush1.bf16.msra.mxu0 %v2014
    %2241 = vmatprep.subr.bf16.mxu0 %v2019
    %2242 = vmatpush1.bf16.msra.mxu0 %v2018
    %2243 = vmatprep.subr.bf16.mxu0 %v2023
    %2244 = vmatpush1.bf16.msra.mxu0 %v2022
    %2245 = vmatprep.subr.bf16.mxu0 %v2027
    %2246 = vmatpush1.bf16.msra.mxu0 %v2026
    %2247 = vmatprep.subr.bf16.mxu0 %v2031
    %2248 = vmatpush1.bf16.msra.mxu0 %v2030
    %2249 = vmatprep.subr.bf16.mxu0 %v2035
    %2250 = vmatpush1.bf16.msra.mxu0 %v2034
    %2251 = vmatprep.subr.bf16.mxu0 %v2039
    %2252 = vmatpush1.bf16.msra.mxu0 %v2038
    %2253 = vmatprep.subr.bf16.mxu0 %v2043
    %2254 = vmatpush1.bf16.msra.mxu0 %v2042
    %2255 = vmatprep.subr.bf16.mxu0 %v2047
    %2256 = vmatpush1.bf16.msra.mxu0 %v2046
    %2257 = vmatprep.subr.bf16.mxu0 %v2051
    %2258 = vmatpush1.bf16.msra.mxu0 %v2050
    %2259 = vmatprep.subr.bf16.mxu0 %v2055
    %2260 = vmatpush1.bf16.msra.mxu0 %v2054
    %2261 = vmatprep.mubr.bf16.mxu0 %v1395
    %2262 = vmatmul.mubr.bf16.gmra.mrb[0].mxu0 %v1394
    %v2263 = vpop.f32.mrb[0].mxu0
    %v2264 = vadd.f32 %v2221, %v2263
    %v2265 = vpop.f32.mrb[0].mxu0
    %v2266 = vadd.f32 %v2223, %v2265
    %v2267 = vpop.f32.mrb[0].mxu0
    %v2268 = vadd.f32 %v2225, %v2267
    %v2269 = vpop.f32.mrb[0].mxu0
    %v2270 = vadd.f32 %v2227, %v2269
    %2271 = vdwg.mxu0
    %2272 = vmatprep.subr.bf16.mxu0 %v1933
    %2273 = vmatpush1.bf16.msra.mxu0 %v1932
    %2274 = vmatprep.subr.bf16.mxu0 %v1937
    %2275 = vmatpush1.bf16.msra.mxu0 %v1936
    %2276 = vmatprep.subr.bf16.mxu0 %v1941
    %2277 = vmatpush1.bf16.msra.mxu0 %v1940
    %2278 = vmatprep.subr.bf16.mxu0 %v1945
    %2279 = vmatpush1.bf16.msra.mxu0 %v1944
    %2280 = vmatprep.subr.bf16.mxu0 %v1949
    %2281 = vmatpush1.bf16.msra.mxu0 %v1948
    %2282 = vmatprep.subr.bf16.mxu0 %v1953
    %2283 = vmatpush1.bf16.msra.mxu0 %v1952
    %2284 = vmatprep.subr.bf16.mxu0 %v1957
    %2285 = vmatpush1.bf16.msra.mxu0 %v1956
    %2286 = vmatprep.subr.bf16.mxu0 %v1961
    %2287 = vmatpush1.bf16.msra.mxu0 %v1960
    %2288 = vmatprep.subr.bf16.mxu0 %v1965
    %2289 = vmatpush1.bf16.msra.mxu0 %v1964
    %2290 = vmatprep.subr.bf16.mxu0 %v1969
    %2291 = vmatpush1.bf16.msra.mxu0 %v1968
    %2292 = vmatprep.subr.bf16.mxu0 %v1973
    %2293 = vmatpush1.bf16.msra.mxu0 %v1972
    %2294 = vmatprep.subr.bf16.mxu0 %v1977
    %2295 = vmatpush1.bf16.msra.mxu0 %v1976
    %2296 = vmatprep.subr.bf16.mxu0 %v1981
    %2297 = vmatpush1.bf16.msra.mxu0 %v1980
    %2298 = vmatprep.subr.bf16.mxu0 %v1985
    %2299 = vmatpush1.bf16.msra.mxu0 %v1984
    %2300 = vmatprep.subr.bf16.mxu0 %v1989
    %2301 = vmatpush1.bf16.msra.mxu0 %v1988
    %2302 = vmatprep.subr.bf16.mxu0 %v1993
    %2303 = vmatpush1.bf16.msra.mxu0 %v1992
    %2304 = vmatprep.mubr.bf16.mxu0 %v1393
    %2305 = vmatmul.mubr.bf16.gmra.mrb[0].mxu0 %v1392
    %v2306 = vpop.f32.mrb[0].mxu0
    %v2307 = vadd.f32 %v1537, %v2306
    %v2308 = vpop.f32.mrb[0].mxu0
    %v2309 = vadd.f32 %v1541, %v2308
    %v2310 = vpop.f32.mrb[0].mxu0
    %v2311 = vadd.f32 %v1537, %v2310
    %v2312 = vpop.f32.mrb[0].mxu0
    %v2313 = vadd.f32 %v1541, %v2312
    %2314 = vdwg.mxu0
    %2315 = vmatprep.subr.bf16.mxu0 %v1997
    %2316 = vmatpush1.bf16.msra.mxu0 %v1996
    %2317 = vmatprep.subr.bf16.mxu0 %v2001
    %2318 = vmatpush1.bf16.msra.mxu0 %v2000
    %2319 = vmatprep.subr.bf16.mxu0 %v2005
    %2320 = vmatpush1.bf16.msra.mxu0 %v2004
    %2321 = vmatprep.subr.bf16.mxu0 %v2009
    %2322 = vmatpush1.bf16.msra.mxu0 %v2008
    %2323 = vmatprep.subr.bf16.mxu0 %v2013
    %2324 = vmatpush1.bf16.msra.mxu0 %v2012
    %2325 = vmatprep.subr.bf16.mxu0 %v2017
    %2326 = vmatpush1.bf16.msra.mxu0 %v2016
    %2327 = vmatprep.subr.bf16.mxu0 %v2021
    %2328 = vmatpush1.bf16.msra.mxu0 %v2020
    %2329 = vmatprep.subr.bf16.mxu0 %v2025
    %2330 = vmatpush1.bf16.msra.mxu0 %v2024
    %2331 = vmatprep.subr.bf16.mxu0 %v2029
    %2332 = vmatpush1.bf16.msra.mxu0 %v2028
    %2333 = vmatprep.subr.bf16.mxu0 %v2033
    %2334 = vmatpush1.bf16.msra.mxu0 %v2032
    %2335 = vmatprep.subr.bf16.mxu0 %v2037
    %2336 = vmatpush1.bf16.msra.mxu0 %v2036
    %2337 = vmatprep.subr.bf16.mxu0 %v2041
    %2338 = vmatpush1.bf16.msra.mxu0 %v2040
    %2339 = vmatprep.subr.bf16.mxu0 %v2045
    %2340 = vmatpush1.bf16.msra.mxu0 %v2044
    %2341 = vmatprep.subr.bf16.mxu0 %v2049
    %2342 = vmatpush1.bf16.msra.mxu0 %v2048
    %2343 = vmatprep.subr.bf16.mxu0 %v2053
    %2344 = vmatpush1.bf16.msra.mxu0 %v2052
    %2345 = vmatprep.subr.bf16.mxu0 %v2057
    %2346 = vmatpush1.bf16.msra.mxu0 %v2056
    %2347 = vmatprep.mubr.bf16.mxu0 %v1395
    %2348 = vmatmul.mubr.bf16.gmra.mrb[0].mxu0 %v1394
    %v2349 = vpop.f32.mrb[0].mxu0
    %v2350 = vadd.f32 %v2307, %v2349
    %v2351 = vpop.f32.mrb[0].mxu0
    %v2352 = vadd.f32 %v2309, %v2351
    %v2353 = vpop.f32.mrb[0].mxu0
    %v2354 = vadd.f32 %v2311, %v2353
    %v2355 = vpop.f32.mrb[0].mxu0
    %v2356 = vadd.f32 %v2313, %v2355
    %2357 = vdwg.mxu0
    %v2358 = vmax.f32 %v2264, 0.0
    %v2359 = vmax.f32 %v2266, 0.0
    %v2360 = vmax.f32 %v2350, 0.0
    %v2361 = vmax.f32 %v2352, 0.0
    %v2362 = vmax.f32 %v2268, 0.0
    %v2363 = vmax.f32 %v2270, 0.0
    %v2364 = vmax.f32 %v2354, 0.0
    %v2365 = vmax.f32 %v2356, 0.0
    %v2366 = vpack.c.bf16 %v2362, %v2358
    %v2367 = vpack.c.bf16 %v2363, %v2359
    %v2368 = vpack.c.bf16 %v2364, %v2360
    %v2369 = vpack.c.bf16 %v2365, %v2361
    %v2370 = vld [vmem:[#allocation10] sm:$0xf]
    %v2371 = vld [vmem:[#allocation10 + $0x4] sm:$0xf]
    %v2372 = vld [vmem:[#allocation10 + $0x8] sm:$0xf]
    %v2373 = vld [vmem:[#allocation10 + $0xc] sm:$0xf]
    %v2374 = vld [vmem:[#allocation10 + $0x10] sm:$0xf]
    %v2375 = vld [vmem:[#allocation10 + $0x14] sm:$0xf]
    %v2376 = vld [vmem:[#allocation10 + $0x18] sm:$0xf]
    %v2377 = vld [vmem:[#allocation10 + $0x1c] sm:$0xf]
    %v2378 = vld [vmem:[#allocation10 + $0x20] sm:$0xf]
    %v2379 = vld [vmem:[#allocation10 + $0x24] sm:$0xf]
    %v2380 = vld [vmem:[#allocation10 + $0x28] sm:$0xf]
    %v2381 = vld [vmem:[#allocation10 + $0x2c] sm:$0xf]
    %v2382 = vld [vmem:[#allocation10 + $0x30] sm:$0xf]
    %v2383 = vld [vmem:[#allocation10 + $0x34] sm:$0xf]
    %v2384 = vld [vmem:[#allocation10 + $0x38] sm:$0xf]
    %v2385 = vld [vmem:[#allocation10 + $0x3c] sm:$0xf]
    %v2386 = vld [vmem:[#allocation10 + $0x40] sm:$0xf]
    %v2387 = vld [vmem:[#allocation10 + $0x44] sm:$0xf]
    %v2388 = vld [vmem:[#allocation10 + $0x48] sm:$0xf]
    %v2389 = vld [vmem:[#allocation10 + $0x4c] sm:$0xf]
    %v2390 = vld [vmem:[#allocation10 + $0x50] sm:$0xf]
    %v2391 = vld [vmem:[#allocation10 + $0x54] sm:$0xf]
    %v2392 = vld [vmem:[#allocation10 + $0x58] sm:$0xf]
    %v2393 = vld [vmem:[#allocation10 + $0x5c] sm:$0xf]
    %v2394 = vld [vmem:[#allocation10 + $0x60] sm:$0xf]
    %v2395 = vld [vmem:[#allocation10 + $0x64] sm:$0xf]
    %v2396 = vld [vmem:[#allocation10 + $0x68] sm:$0xf]
    %v2397 = vld [vmem:[#allocation10 + $0x6c] sm:$0xf]
    %v2398 = vld [vmem:[#allocation10 + $0x70] sm:$0xf]
    %v2399 = vld [vmem:[#allocation10 + $0x74] sm:$0xf]
    %v2400 = vld [vmem:[#allocation10 + $0x78] sm:$0xf]
    %v2401 = vld [vmem:[#allocation10 + $0x7c] sm:$0xf]
    %v2402 = vld [vmem:[#allocation10 + $0x80] sm:$0xf]
    %v2403 = vld [vmem:[#allocation10 + $0x84] sm:$0xf]
    %v2404 = vld [vmem:[#allocation10 + $0x88] sm:$0xf]
    %v2405 = vld [vmem:[#allocation10 + $0x8c] sm:$0xf]
    %v2406 = vld [vmem:[#allocation10 + $0x90] sm:$0xf]
    %v2407 = vld [vmem:[#allocation10 + $0x94] sm:$0xf]
    %v2408 = vld [vmem:[#allocation10 + $0x98] sm:$0xf]
    %v2409 = vld [vmem:[#allocation10 + $0x9c] sm:$0xf]
    %v2410 = vld [vmem:[#allocation10 + $0xa0] sm:$0xf]
    %v2411 = vld [vmem:[#allocation10 + $0xa4] sm:$0xf]
    %v2412 = vld [vmem:[#allocation10 + $0xa8] sm:$0xf]
    %v2413 = vld [vmem:[#allocation10 + $0xac] sm:$0xf]
    %v2414 = vld [vmem:[#allocation10 + $0xb0] sm:$0xf]
    %v2415 = vld [vmem:[#allocation10 + $0xb4] sm:$0xf]
    %v2416 = vld [vmem:[#allocation10 + $0xb8] sm:$0xf]
    %v2417 = vld [vmem:[#allocation10 + $0xbc] sm:$0xf]
    %v2418 = vld [vmem:[#allocation10 + $0xc0] sm:$0xf]
    %v2419 = vld [vmem:[#allocation10 + $0xc4] sm:$0xf]
    %v2420 = vld [vmem:[#allocation10 + $0xc8] sm:$0xf]
    %v2421 = vld [vmem:[#allocation10 + $0xcc] sm:$0xf]
    %v2422 = vld [vmem:[#allocation10 + $0xd0] sm:$0xf]
    %v2423 = vld [vmem:[#allocation10 + $0xd4] sm:$0xf]
    %v2424 = vld [vmem:[#allocation10 + $0xd8] sm:$0xf]
    %v2425 = vld [vmem:[#allocation10 + $0xdc] sm:$0xf]
    %v2426 = vld [vmem:[#allocation10 + $0xe0] sm:$0xf]
    %v2427 = vld [vmem:[#allocation10 + $0xe4] sm:$0xf]
    %v2428 = vld [vmem:[#allocation10 + $0xe8] sm:$0xf]
    %v2429 = vld [vmem:[#allocation10 + $0xec] sm:$0xf]
    %v2430 = vld [vmem:[#allocation10 + $0xf0] sm:$0xf]
    %v2431 = vld [vmem:[#allocation10 + $0xf4] sm:$0xf]
    %v2432 = vld [vmem:[#allocation10 + $0xf8] sm:$0xf]
    %v2433 = vld [vmem:[#allocation10 + $0xfc] sm:$0xf]
    %v2434 = vld [vmem:[%s8] sm:$0x1]
    %v2436 = vlaneseq
    %v2437 = vshrl.u32 %v2436, 7
    %v2438 = vsub.s32 0, %v2437
    %v2439 = vrot.slane %v2434, %v2438
    %v2505 = vunpack.c.l.b16 %v2370
    %v2506 = vunpack.c.l.b16 %v2371
    %v2507 = vunpack.c.l.b16 %v2372
    %v2508 = vunpack.c.l.b16 %v2373
    %v2509 = vunpack.c.l.b16 %v2374
    %v2510 = vunpack.c.l.b16 %v2375
    %v2511 = vunpack.c.l.b16 %v2376
    %v2512 = vunpack.c.l.b16 %v2377
    %v2513 = vunpack.c.l.b16 %v2378
    %v2514 = vunpack.c.l.b16 %v2379
    %v2515 = vunpack.c.l.b16 %v2380
    %v2516 = vunpack.c.l.b16 %v2381
    %v2517 = vunpack.c.l.b16 %v2382
    %v2518 = vunpack.c.l.b16 %v2383
    %v2519 = vunpack.c.l.b16 %v2384
    %v2520 = vunpack.c.l.b16 %v2385
    %v2521 = vunpack.c.l.b16 %v2386
    %v2522 = vunpack.c.l.b16 %v2387
    %v2523 = vunpack.c.l.b16 %v2388
    %v2524 = vunpack.c.l.b16 %v2389
    %v2525 = vunpack.c.l.b16 %v2390
    %v2526 = vunpack.c.l.b16 %v2391
    %v2527 = vunpack.c.l.b16 %v2392
    %v2528 = vunpack.c.l.b16 %v2393
    %v2529 = vunpack.c.l.b16 %v2394
    %v2530 = vunpack.c.l.b16 %v2395
    %v2531 = vunpack.c.l.b16 %v2396
    %v2532 = vunpack.c.l.b16 %v2397
    %v2533 = vunpack.c.l.b16 %v2398
    %v2534 = vunpack.c.l.b16 %v2399
    %v2535 = vunpack.c.l.b16 %v2400
    %v2536 = vunpack.c.l.b16 %v2401
    %v2537 = vunpack.c.l.b16 %v2402
    %v2538 = vunpack.c.l.b16 %v2403
    %v2539 = vunpack.c.l.b16 %v2404
    %v2540 = vunpack.c.l.b16 %v2405
    %v2541 = vunpack.c.l.b16 %v2406
    %v2542 = vunpack.c.l.b16 %v2407
    %v2543 = vunpack.c.l.b16 %v2408
    %v2544 = vunpack.c.l.b16 %v2409
    %v2545 = vunpack.c.l.b16 %v2410
    %v2546 = vunpack.c.l.b16 %v2411
    %v2547 = vunpack.c.l.b16 %v2412
    %v2548 = vunpack.c.l.b16 %v2413
    %v2549 = vunpack.c.l.b16 %v2414
    %v2550 = vunpack.c.l.b16 %v2415
    %v2551 = vunpack.c.l.b16 %v2416
    %v2552 = vunpack.c.l.b16 %v2417
    %v2553 = vunpack.c.l.b16 %v2418
    %v2554 = vunpack.c.l.b16 %v2419
    %v2555 = vunpack.c.l.b16 %v2420
    %v2556 = vunpack.c.l.b16 %v2421
    %v2557 = vunpack.c.l.b16 %v2422
    %v2558 = vunpack.c.l.b16 %v2423
    %v2559 = vunpack.c.l.b16 %v2424
    %v2560 = vunpack.c.l.b16 %v2425
    %v2561 = vunpack.c.l.b16 %v2426
    %v2562 = vunpack.c.l.b16 %v2427
    %v2563 = vunpack.c.l.b16 %v2428
    %v2564 = vunpack.c.l.b16 %v2429
    %v2565 = vunpack.c.l.b16 %v2430
    %v2566 = vunpack.c.l.b16 %v2431
    %v2567 = vunpack.c.l.b16 %v2432
    %v2568 = vunpack.c.l.b16 %v2433
    %v2569 = vpack.c.b16 %v2506, %v2505
    %v2570 = vpack.c.b16 %v2508, %v2507
    %v2571 = vpack.c.b16 %v2510, %v2509
    %v2572 = vpack.c.b16 %v2512, %v2511
    %v2573 = vpack.c.b16 %v2514, %v2513
    %v2574 = vpack.c.b16 %v2516, %v2515
    %v2575 = vpack.c.b16 %v2518, %v2517
    %v2576 = vpack.c.b16 %v2520, %v2519
    %v2577 = vpack.c.b16 %v2522, %v2521
    %v2578 = vpack.c.b16 %v2524, %v2523
    %v2579 = vpack.c.b16 %v2526, %v2525
    %v2580 = vpack.c.b16 %v2528, %v2527
    %v2581 = vpack.c.b16 %v2530, %v2529
    %v2582 = vpack.c.b16 %v2532, %v2531
    %v2583 = vpack.c.b16 %v2534, %v2533
    %v2584 = vpack.c.b16 %v2536, %v2535
    %v2585 = vpack.c.b16 %v2538, %v2537
    %v2586 = vpack.c.b16 %v2540, %v2539
    %v2587 = vpack.c.b16 %v2542, %v2541
    %v2588 = vpack.c.b16 %v2544, %v2543
    %v2589 = vpack.c.b16 %v2546, %v2545
    %v2590 = vpack.c.b16 %v2548, %v2547
    %v2591 = vpack.c.b16 %v2550, %v2549
    %v2592 = vpack.c.b16 %v2552, %v2551
    %v2593 = vpack.c.b16 %v2554, %v2553
    %v2594 = vpack.c.b16 %v2556, %v2555
    %v2595 = vpack.c.b16 %v2558, %v2557
    %v2596 = vpack.c.b16 %v2560, %v2559
    %v2597 = vpack.c.b16 %v2562, %v2561
    %v2598 = vpack.c.b16 %v2564, %v2563
    %v2599 = vpack.c.b16 %v2566, %v2565
    %v2600 = vpack.c.b16 %v2568, %v2567
    %2633 = vmatprep.subr.bf16.mxu0 0
    %2634 = vmatpush1.bf16.msra.mxu0 %v2569
    %2635 = vmatprep.subr.bf16.mxu0 0
    %2636 = vmatpush1.bf16.msra.mxu0 %v2570
    %2637 = vmatprep.subr.bf16.mxu0 0
    %2638 = vmatpush1.bf16.msra.mxu0 %v2571
    %2639 = vmatprep.subr.bf16.mxu0 0
    %2640 = vmatpush1.bf16.msra.mxu0 %v2572
    %2641 = vmatprep.subr.bf16.mxu0 0
    %2642 = vmatpush1.bf16.msra.mxu0 %v2573
    %2643 = vmatprep.subr.bf16.mxu0 0
    %2644 = vmatpush1.bf16.msra.mxu0 %v2574
    %2645 = vmatprep.subr.bf16.mxu0 0
    %2646 = vmatpush1.bf16.msra.mxu0 %v2575
    %2647 = vmatprep.subr.bf16.mxu0 0
    %2648 = vmatpush1.bf16.msra.mxu0 %v2576
    %2649 = vmatprep.subr.bf16.mxu0 0
    %2650 = vmatpush1.bf16.msra.mxu0 %v2577
    %2651 = vmatprep.subr.bf16.mxu0 0
    %2652 = vmatpush1.bf16.msra.mxu0 %v2578
    %2653 = vmatprep.subr.bf16.mxu0 0
    %2654 = vmatpush1.bf16.msra.mxu0 %v2579
    %2655 = vmatprep.subr.bf16.mxu0 0
    %2656 = vmatpush1.bf16.msra.mxu0 %v2580
    %2657 = vmatprep.subr.bf16.mxu0 0
    %2658 = vmatpush1.bf16.msra.mxu0 %v2581
    %2659 = vmatprep.subr.bf16.mxu0 0
    %2660 = vmatpush1.bf16.msra.mxu0 %v2582
    %2661 = vmatprep.subr.bf16.mxu0 0
    %2662 = vmatpush1.bf16.msra.mxu0 %v2583
    %2663 = vmatprep.subr.bf16.mxu0 0
    %2664 = vmatpush1.bf16.msra.mxu0 %v2584
    %2665 = vmatprep.mubr.bf16.mxu0 %v2367
    %2666 = vmatmul.mubr.bf16.gmra.mrb[0].mxu0 %v2366
    %v2667 = vpop.f32.mrb[0].mxu0
    %v2668 = vadd.f32 %v2439, %v2667
    %v2669 = vpop.f32.mrb[0].mxu0
    %v2670 = vpop.f32.mrb[0].mxu0
    %v2671 = vadd.f32 %v2439, %v2670
    %v2672 = vpop.f32.mrb[0].mxu0
    %2673 = vdwg.mxu0
    %2674 = vmatprep.subr.bf16.mxu0 0
    %2675 = vmatpush1.bf16.msra.mxu0 %v2585
    %2676 = vmatprep.subr.bf16.mxu0 0
    %2677 = vmatpush1.bf16.msra.mxu0 %v2586
    %2678 = vmatprep.subr.bf16.mxu0 0
    %2679 = vmatpush1.bf16.msra.mxu0 %v2587
    %2680 = vmatprep.subr.bf16.mxu0 0
    %2681 = vmatpush1.bf16.msra.mxu0 %v2588
    %2682 = vmatprep.subr.bf16.mxu0 0
    %2683 = vmatpush1.bf16.msra.mxu0 %v2589
    %2684 = vmatprep.subr.bf16.mxu0 0
    %2685 = vmatpush1.bf16.msra.mxu0 %v2590
    %2686 = vmatprep.subr.bf16.mxu0 0
    %2687 = vmatpush1.bf16.msra.mxu0 %v2591
    %2688 = vmatprep.subr.bf16.mxu0 0
    %2689 = vmatpush1.bf16.msra.mxu0 %v2592
    %2690 = vmatprep.subr.bf16.mxu0 0
    %2691 = vmatpush1.bf16.msra.mxu0 %v2593
    %2692 = vmatprep.subr.bf16.mxu0 0
    %2693 = vmatpush1.bf16.msra.mxu0 %v2594
    %2694 = vmatprep.subr.bf16.mxu0 0
    %2695 = vmatpush1.bf16.msra.mxu0 %v2595
    %2696 = vmatprep.subr.bf16.mxu0 0
    %2697 = vmatpush1.bf16.msra.mxu0 %v2596
    %2698 = vmatprep.subr.bf16.mxu0 0
    %2699 = vmatpush1.bf16.msra.mxu0 %v2597
    %2700 = vmatprep.subr.bf16.mxu0 0
    %2701 = vmatpush1.bf16.msra.mxu0 %v2598
    %2702 = vmatprep.subr.bf16.mxu0 0
    %2703 = vmatpush1.bf16.msra.mxu0 %v2599
    %2704 = vmatprep.subr.bf16.mxu0 0
    %2705 = vmatpush1.bf16.msra.mxu0 %v2600
    %2706 = vmatprep.mubr.bf16.mxu0 %v2369
    %2707 = vmatmul.mubr.bf16.gmra.mrb[0].mxu0 %v2368
    %v2708 = vpop.f32.mrb[0].mxu0
    %v2709 = vadd.f32 %v2668, %v2708
    %v2710 = vpop.f32.mrb[0].mxu0
    %v2711 = vpop.f32.mrb[0].mxu0
    %v2712 = vadd.f32 %v2671, %v2711
    %v2713 = vpop.f32.mrb[0].mxu0
    %2714 = vdwg.mxu0
    %v2715 = vpack.c.bf16 %v2712, %v2709
    %v2717 = vunpack.c.l.b16 %v2715
    %v2718 = vunpack.c.h.b16 %v2715
    %v2719 = vpack.c.b16 %v2717, %v2717
    %v2720 = vpack.c.b16 %v2718, %v2718
    %2723 = vst [vmem:[#allocation11] sm:$0xf] %v2719
    %2724 = vst [vmem:[#allocation11 + $0x4] sm:$0xf] %v2720
    // Predicated region
    $region58: #{tpu_custom_call.1} parent=1 // pred_check
      _
    $region59: #{tpu_custom_call.1} parent=1 // pred_check_branch
      %2726 = sbr.rel (0) target = $region61
    $region60: #{tpu_custom_call.1} parent=1 // pred_region
      %s2728 = ssub.s32 128, 128
      %2729 = vsyncadd [#allocation4], %s2728
      %s2730 = sshll.u32 [#allocation11], 4
      %s2731 = int_to_ptr.vmem [resolvable:$true] %s2730
      %2736 = dma.vmem_to_hbm [thread:$0]  %s2731, 128, %s9, [#allocation4], 64, 64, 4
    $region61: #{tpu_custom_call.1} parent=1 // pred_fallthru
      _
    // Predicated region
    $region62: #{tpu_custom_call.1} parent=1 // pred_check
      _
    $region63: #{tpu_custom_call.1} parent=1 // pred_check_branch
      %2738 = sbr.rel (0) target = $region65
    $region64: #{tpu_custom_call.1} parent=1 // pred_region
      %2739 = dma.done [#allocation4], 128
    $region65: #{tpu_custom_call.1} parent=1 // pred_fallthru
      _
    %2740 = vsyncpa [#allocation3], 1
    %2741 = vsyncpa [#allocation6], 1
    %2742 = vsyncpa [#allocation9], 1
    %2743 = vsyncpa [#allocation4], 1

</llo_original>
